<compile_context>
chip_gen: v7x
topology: tpu7x:2x2x1
jax: 0.10.0
libtpu: 0.0.40
codegen_flags: <defaults>
</compile_context>

<pallas_src>
import numpy as np
import jax
import jax.numpy as jnp
from jax.experimental import pallas as pl
from jax.experimental.pallas import tpu as pltpu


def _round_up(x, m):
    return (x + m - 1) // m * m


# ----------------------------- GRU Pallas kernel -----------------------------
def gru_kernel(gi_ref, h0_ref, whh_ref, bhhn_ref, out_ref, h_scr):
    # gi_ref  : (Tc, Bb, 3Hp) f32   pre-gathered input projections (streamed)
    # h0_ref  : (Bb, Hp)      f32   initial hidden state for this batch block
    # whh_ref : (Hp, 3Hp)     bf16  fused recurrent weights (VMEM-resident)
    # bhhn_ref: (1, Hp)       f32   b_hh of the n gate (stays inside r*(...))
    # out_ref : (Tc, Bb, Hp)  f32   hidden states for this chunk (streamed)
    # h_scr   : (Bb, Hp)      f32   hidden-state carry across time chunks
    Tc, Bb, _ = gi_ref.shape
    Hp = out_ref.shape[2]

    # New batch block -> (re)initialize the carry from enc_out.
    @pl.when(pl.program_id(1) == 0)
    def _():
        h_scr[...] = h0_ref[...]

    # Hoist weight load / bias broadcast out of the time loop.
    w_hh = whh_ref[...]                                   # (Hp, 3Hp) bf16
    b_hh_n = jnp.broadcast_to(bhhn_ref[...], (Bb, Hp))    # (Bb, Hp)  f32

    def step(tt, h):
        gi = gi_ref[tt]                                   # (Bb, 3Hp) f32
        # bf16 operands, f32 accumulate on the MXU.
        gh = jnp.dot(h.astype(jnp.bfloat16), w_hh,
                     preferred_element_type=jnp.float32)  # (Bb, 3Hp)
        r = jax.nn.sigmoid(gi[:, 0:Hp] + gh[:, 0:Hp])
        z = jax.nn.sigmoid(gi[:, Hp:2 * Hp] + gh[:, Hp:2 * Hp])
        n = jnp.tanh(gi[:, 2 * Hp:3 * Hp] + r * (gh[:, 2 * Hp:3 * Hp] + b_hh_n))
        h_new = (1.0 - z) * n + z * h
        out_ref[tt] = h_new.astype(out_ref.dtype)         # lane-dense store
        return h_new

    # Bounded unroll: Tc (chunk length) steps only, not the whole sequence.
    h_final = jax.lax.fori_loop(0, Tc, step, h_scr[...], unroll=True)
    h_scr[...] = h_final                                  # carry to next chunk


def gru_forward(gi, h0, w_hh_bf, b_hh_n, *, Tc, Bb):
    T_pad, Bp, H3 = gi.shape
    Hp = h0.shape[1]
    grid = (Bp // Bb, T_pad // Tc)
    return pl.pallas_call(
        gru_kernel,
        out_shape=jax.ShapeDtypeStruct((T_pad, Bp, Hp), jnp.float32),
        grid_spec=pltpu.PrefetchScalarGridSpec(
            num_scalar_prefetch=0,
            grid=grid,
            in_specs=[
                pl.BlockSpec((Tc, Bb, H3), lambda b, t: (t, b, 0)),   # GI chunk
                pl.BlockSpec((Bb, Hp),     lambda b, t: (b, 0)),      # h0 block
                pl.BlockSpec((Hp, H3),     lambda b, t: (0, 0)),      # W_hh
                pl.BlockSpec((1, Hp),      lambda b, t: (0, 0)),      # b_hh (n)
            ],
            out_specs=pl.BlockSpec((Tc, Bb, Hp), lambda b, t: (t, b, 0)),
            scratch_shapes=[pltpu.VMEM((Bb, Hp), jnp.float32)],
        ),
        compiler_params=pltpu.CompilerParams(
            dimension_semantics=("parallel", "arbitrary"),
            vmem_limit_bytes=64 * 1024 * 1024),
    )(gi, h0, w_hh_bf, b_hh_n)


# ---------------------------- Dense Pallas kernel -----------------------------
def dense_kernel(x_ref, w_ref, b_ref, o_ref):
    # x_ref (tn, Hp) bf16, w_ref (Hp, tv) bf16, b_ref (1, tv) f32 -> f32 out.
    o_ref[...] = (
        jnp.dot(x_ref[...], w_ref[...], preferred_element_type=jnp.float32)
        + b_ref[...]
    ).astype(o_ref.dtype)


def dense_forward(x_bf, w_bf, b, *, tn, tv):
    N, H = x_bf.shape
    V = w_bf.shape[1]
    # V is the OUTER grid axis: the weight tile stays fixed while N iterates,
    # so the (H, V) weight is DMA'd from HBM exactly once per call.
    grid = (V // tv, N // tn)
    return pl.pallas_call(
        dense_kernel,
        out_shape=jax.ShapeDtypeStruct((N, V), jnp.float32),
        grid_spec=pltpu.PrefetchScalarGridSpec(
            num_scalar_prefetch=0,
            grid=grid,
            in_specs=[
                pl.BlockSpec((tn, H), lambda j, i: (i, 0)),
                pl.BlockSpec((H, tv), lambda j, i: (0, j)),
                pl.BlockSpec((1, tv), lambda j, i: (0, j)),
            ],
            out_specs=pl.BlockSpec((tn, tv), lambda j, i: (i, j)),
        ),
        compiler_params=pltpu.CompilerParams(
            dimension_semantics=("parallel", "parallel"),
            vmem_limit_bytes=64 * 1024 * 1024),
    )(x_bf, w_bf, b)


# --------------------------- Host-side weight packing --------------------------
def pack_gru_weights(w_ih, w_hh, b_ih, b_hh, Hp):
    """Repack gate-separated weights (3,E,H)/(3,H,H)/(3,1,H) into fused,
    lane-padded (E,3Hp)/(Hp,3Hp) matrices and pre-folded biases."""
    _, E, H = w_ih.shape
    w_ih_p = np.zeros((E, 3 * Hp), np.float32)
    w_hh_p = np.zeros((Hp, 3 * Hp), np.float32)
    b_full = np.zeros((1, 3 * Hp), np.float32)
    b_hh_n = np.zeros((1, Hp), np.float32)
    for g in range(3):
        w_ih_p[:, g * Hp: g * Hp + H] = np.asarray(w_ih[g])
        w_hh_p[:H, g * Hp: g * Hp + H] = np.asarray(w_hh[g])
    # r, z: additive biases -> fold b_ih + b_hh once.
    b_full[0, 0 * Hp: 0 * Hp + H] = np.asarray(b_ih[0, 0] + b_hh[0, 0])
    b_full[0, 1 * Hp: 1 * Hp + H] = np.asarray(b_ih[1, 0] + b_hh[1, 0])
    # n: b_ih outside, b_hh inside the r*(...) product.
    b_full[0, 2 * Hp: 2 * Hp + H] = np.asarray(b_ih[2, 0])
    b_hh_n[0, :H] = np.asarray(b_hh[2, 0])
    return (jnp.asarray(w_ih_p), jnp.asarray(w_hh_p),
            jnp.asarray(b_full), jnp.asarray(b_hh_n))


def pack_dense_weights(w, b, Hp, Vp):
    H, V = w.shape
    w_p = np.zeros((Hp, Vp), np.float32)
    w_p[:H, :V] = np.asarray(w)
    b_p = np.zeros((1, Vp), np.float32)
    b_p[0, :V] = np.asarray(b[0])
    return jnp.asarray(w_p), jnp.asarray(b_p)


# ------------------------------ Glue / wrapper --------------------------------
def pack_indices(lengths):
    """PyTorch pack_padded_sequence(enforce_sorted=False) data ordering:
    sort batches by descending length, then iterate time-major over active rows.
    (Stable sort; matches PyTorch when lengths are distinct.)"""
    lengths = np.asarray(lengths)
    order = np.argsort(-lengths, kind="stable")
    t_idx, b_idx = [], []
    for t in range(int(lengths.max())):
        for b in order:
            if lengths[b] > t:
                t_idx.append(t)
                b_idx.append(int(b))
    return np.array(t_idx, np.int32), np.array(b_idx, np.int32)


def language_decoder_forward(params, enc_out, tgt, tgt_len):
    B, T = tgt.shape
    H = enc_out.shape[1]
    V = params["w_dense"].shape[1]

    Hp = _round_up(H, 128)   # lane-dense hidden state / unmasked stores
    Vp = _round_up(V, 128)   # lane-dense logits

    # Batch blocking: a single 8-row block for tiny batches; for larger
    # batches split into two blocks so v7x's two TensorCores each take half
    # (the batch grid axis is marked "parallel").
    Bp = _round_up(B, 8)
    if Bp < 16:
        Bb = Bp
    else:
        Bb = _round_up((Bp + 1) // 2, 16)
        Bp = _round_up(Bp, Bb)

    Tc = 8                              # time-chunk length (bounded unroll)
    T_pad = _round_up(T, Tc)

    w_ih_p, w_hh_p, b_full, b_hh_n = pack_gru_weights(
        params["w_ih"], params["w_hh"], params["b_ih"], params["b_hh"], Hp)
    w_hh_bf = w_hh_p.astype(jnp.bfloat16)   # bf16 matmul operand, f32 acc in-kernel

    # Fold the input projection into the embedding: a (V, 3Hp) table built once
    # (accurate f32); per-token GI is then a gather -- no (T*B, E) matmul.
    proj_table = jnp.dot(params["embedding"], w_ih_p,
                         precision=jax.lax.Precision.HIGHEST) + b_full

    tgt_T = jnp.transpose(tgt, (1, 0)).astype(jnp.int32)            # (T, B)
    tgt_T = jnp.pad(tgt_T, ((0, T_pad - T), (0, Bp - B)))           # pad tok 0
    gi = jnp.take(proj_table, tgt_T, axis=0)                        # (T_pad, Bp, 3Hp)

    h0 = jnp.pad(enc_out.astype(jnp.float32),
                 ((0, Bp - B), (0, Hp - H)))                        # (Bp, Hp)

    # GRU hot path: streamed, pipelined Pallas kernel.
    h_out = gru_forward(gi, h0, w_hh_bf, b_hh_n, Tc=Tc, Bb=Bb)      # (T_pad, Bp, Hp)

    # Packed gather (concrete lengths), then tiled dense hot path.
    eff_len = np.asarray(tgt_len) - 1
    t_idx, b_idx = pack_indices(eff_len)
    packed_h = h_out[t_idx, b_idx]                                  # (N, Hp) f32
    N = packed_h.shape[0]

    tn = min(256, _round_up(N, 16))
    Np = _round_up(N, tn)
    tv = min(512, Vp)
    Vp2 = _round_up(Vp, tv)

    packed_h = jnp.pad(packed_h, ((0, Np - N), (0, 0)))
    x_bf = packed_h.astype(jnp.bfloat16)                            # bf16 operand

    w_dense_p, b_dense_p = pack_dense_weights(
        params["w_dense"], params["b_dense"], Hp, Vp2)
    logits = dense_forward(x_bf, w_dense_p.astype(jnp.bfloat16), b_dense_p,
                           tn=tn, tv=tv)                            # (Np, Vp2)
    return logits[:N, :V]                                           # (N_packed, V)


# ------------------------------ Reference (JAX) --------------------------------
def gru_ref(x_tbe, h0, w_ih, w_hh, b_ih, b_hh):
    """Pure-JAX reference mirroring the kernel numerics: input projection in
    accurate f32, recurrent matmul with bf16 operands / f32 accumulation."""
    w_hh_bf = w_hh.astype(jnp.bfloat16)

    def step(h, x):
        hb = h.astype(jnp.bfloat16)
        gh = [jnp.dot(hb, w_hh_bf[g], preferred_element_type=jnp.float32)
              for g in range(3)]
        gi = [jnp.dot(x, w_ih[g], precision=jax.lax.Precision.HIGHEST) + b_ih[g]
              for g in range(3)]
        r = jax.nn.sigmoid(gi[0] + gh[0] + b_hh[0])
        z = jax.nn.sigmoid(gi[1] + gh[1] + b_hh[1])
        n = jnp.tanh(gi[2] + r * (gh[2] + b_hh[2]))
        h_new = (1.0 - z) * n + z * h
        return h_new, h_new

    _, ys = jax.lax.scan(step, h0, x_tbe)
    return ys


if __name__ == "__main__":
    # Small, self-consistent shapes
    B, T = 4, 8
    E, H = 32, 64          # embedding_dim, hidden_dim
    V = 128                # vocab size (len(vocab))

    key = jax.random.PRNGKey(0)
    ks = jax.random.split(key, 10)

    # Deterministic synthetic parameters (shapes follow the nn.Module __init__)
    embedding = jax.random.normal(ks[0], (V, E), jnp.float32) * 0.1
    embedding = embedding.at[0].set(0.0)                       # padding_idx=0
    params = {
        "embedding": embedding,
        "w_ih": jax.random.normal(ks[1], (3, E, H), jnp.float32) * 0.1,  # gates r,z,n
        "w_hh": jax.random.normal(ks[2], (3, H, H), jnp.float32) * 0.1,
        "b_ih": jax.random.normal(ks[3], (3, 1, H), jnp.float32) * 0.1,
        "b_hh": jax.random.normal(ks[4], (3, 1, H), jnp.float32) * 0.1,
        "w_dense": jax.random.normal(ks[5], (H, V), jnp.float32) * 0.1,
        "b_dense": jax.random.normal(ks[6], (1, V), jnp.float32) * 0.1,
    }

    # Inputs: enc_out (B, H) image features, tgt (B, T) token ids, tgt_len (B,)
    enc_out = jax.random.normal(ks[7], (B, H), jnp.float32)
    tgt = jax.random.randint(ks[8], (B, T), 1, V, dtype=jnp.int32)
    tgt_len = np.array([8, 6, 7, 5], np.int32)                 # effective lens = tgt_len - 1
    # zero-pad tokens past each length (functional mask)
    valid = jnp.asarray(np.arange(T)[None, :] < tgt_len[:, None])
    tgt = jnp.where(valid, tgt, 0)

    logits = language_decoder_forward(params, enc_out, tgt, tgt_len)
    logits = jax.block_until_ready(logits)

    # Cross-check against a pure-JAX reference of the same math (bf16 matmul
    # operands, f32 accumulate -- tolerance sized for bf16 rounding).
    x_tbe = jnp.transpose(jnp.take(params["embedding"], tgt, axis=0), (1, 0, 2))
    h_ref = gru_ref(x_tbe, enc_out, params["w_ih"], params["w_hh"],
                    params["b_ih"], params["b_hh"])
    t_idx, b_idx = pack_indices(tgt_len - 1)
    packed_h_ref = h_ref[t_idx, b_idx]
    logits_ref = (jnp.dot(packed_h_ref.astype(jnp.bfloat16),
                          params["w_dense"].astype(jnp.bfloat16),
                          preferred_element_type=jnp.float32)
                  + params["b_dense"])

    expected_n = int(np.sum(tgt_len - 1))
    assert logits.shape == (expected_n, V), logits.shape
    np.testing.assert_allclose(np.asarray(logits), np.asarray(logits_ref),
                               rtol=1e-2, atol=1e-2)

    print("KERNEL_OK")
</pallas_src>

<mosaic_0001>
module attributes {stable_mosaic.version = 11 : i64} {
  func.func @gru_kernel(%arg0: i32, %arg1: i32, %arg2: memref<8x8x384xf32, #tpu.memory_space<vmem>>, %arg3: memref<8x128xf32, #tpu.memory_space<vmem>>, %arg4: memref<128x384xbf16, #tpu.memory_space<vmem>>, %arg5: memref<1x128xf32, #tpu.memory_space<vmem>>, %arg6: memref<8x8x128xf32, #tpu.memory_space<vmem>>, %arg7: memref<8x128xf32, #tpu.memory_space<vmem>>) attributes {dimension_semantics = [#tpu.dimension_semantics<parallel>, #tpu.dimension_semantics<arbitrary>], iteration_bounds = array<i64: 1, 1>, scalar_prefetch = 0 : i64, scratch_operands = 1 : i64, tpu.core_type = #tpu.core_type<tc>, window_params = [{transform_indices = @transform_0, window_bounds = array<i64: 8, 8, 384>}, {transform_indices = @transform_1, window_bounds = array<i64: 8, 128>}, {pipeline_mode = #tpu.pipeline_mode<synchronous>, transform_indices = @transform_2, window_bounds = array<i64: 128, 384>}, {pipeline_mode = #tpu.pipeline_mode<synchronous>, transform_indices = @transform_3, window_bounds = array<i64: 1, 128>}, {transform_indices = @transform_4, window_bounds = array<i64: 8, 8, 128>}]} {
    %c0_i32 = arith.constant 0 : i32
    %0 = arith.cmpi eq, %arg1, %c0_i32 : i32
    %1 = arith.extui %0 : i1 to i32
    %c0_i32_0 = arith.constant 0 : i32
    %2 = arith.cmpi ne, %1, %c0_i32_0 : i32
    scf.if %2 {
      %c0_72 = arith.constant 0 : index
      %c0_73 = arith.constant 0 : index
      %297 = vector.load %arg3[%c0_72, %c0_73] : memref<8x128xf32, #tpu.memory_space<vmem>>, vector<8x128xf32>
      %c0_74 = arith.constant 0 : index
      %c0_75 = arith.constant 0 : index
      %298 = vector.load %arg7[%c0_74, %c0_75] : memref<8x128xf32, #tpu.memory_space<vmem>>, vector<8x128xf32>
      tpu.vector_store %arg7[%c0_74, %c0_75], %297 {strides = array<i32>} : memref<8x128xf32, #tpu.memory_space<vmem>>, vector<8x128xf32>,
    } else {
    }
    %c0 = arith.constant 0 : index
    %c0_1 = arith.constant 0 : index
    %3 = vector.load %arg4[%c0, %c0_1] : memref<128x384xbf16, #tpu.memory_space<vmem>>, vector<128x384xbf16>
    %c0_2 = arith.constant 0 : index
    %c0_3 = arith.constant 0 : index
    %4 = vector.load %arg5[%c0_2, %c0_3] : memref<1x128xf32, #tpu.memory_space<vmem>>, vector<1x128xf32>
    %5 = vector.shape_cast %4 : vector<1x128xf32> to vector<1x128xf32>
    %6 = vector.broadcast %5 : vector<1x128xf32> to vector<8x128xf32>
    %c0_4 = arith.constant 0 : index
    %c0_5 = arith.constant 0 : index
    %7 = vector.load %arg7[%c0_4, %c0_5] : memref<8x128xf32, #tpu.memory_space<vmem>>, vector<8x128xf32>
    %c0_i32_6 = arith.constant 0 : i32
    %8 = arith.index_cast %c0_i32_6 : i32 to index
    %c0_7 = arith.constant 0 : index
    %c0_8 = arith.constant 0 : index
    %9 = vector.load %arg2[%8, %c0_7, %c0_8] : memref<8x8x384xf32, #tpu.memory_space<vmem>>, vector<1x8x384xf32>
    %10 = vector.shape_cast %9 : vector<1x8x384xf32> to vector<8x384xf32>
    %11 = arith.truncf %7 : vector<8x128xf32> to vector<8x128xbf16>
    %cst = arith.constant dense<0.000000e+00> : vector<8x384xf32>
    %12 = tpu.matmul %11, %3, %cst {dimension_numbers = #tpu.dot_dimension_numbers<[1], [0], [0], [1], [0, 0, 1, 1], [], []>} : vector<8x128xbf16>, vector<128x384xbf16>, vector<8x384xf32> -> vector<8x384xf32>
    %13 = vector.extract_strided_slice %10 {offsets = [0, 0], sizes = [8, 128], strides = [1, 1]} : vector<8x384xf32> to vector<8x128xf32>
    %14 = vector.extract_strided_slice %12 {offsets = [0, 0], sizes = [8, 128], strides = [1, 1]} : vector<8x384xf32> to vector<8x128xf32>
    %15 = arith.addf %13, %14 : vector<8x128xf32>
    %16 = arith.negf %15 : vector<8x128xf32>
    %17 = math.exp %16 : vector<8x128xf32>
    %cst_9 = arith.constant 1.000000e+00 : f32
    %18 = vector.broadcast %cst_9 : f32 to vector<8x128xf32>
    %19 = arith.addf %18, %17 : vector<8x128xf32>
    %20 = arith.divf %18, %19 : vector<8x128xf32>
    %21 = vector.extract_strided_slice %10 {offsets = [0, 128], sizes = [8, 128], strides = [1, 1]} : vector<8x384xf32> to vector<8x128xf32>
    %22 = vector.extract_strided_slice %12 {offsets = [0, 128], sizes = [8, 128], strides = [1, 1]} : vector<8x384xf32> to vector<8x128xf32>
    %23 = arith.addf %21, %22 : vector<8x128xf32>
    %24 = arith.negf %23 : vector<8x128xf32>
    %25 = math.exp %24 : vector<8x128xf32>
    %cst_10 = arith.constant 1.000000e+00 : f32
    %26 = vector.broadcast %cst_10 : f32 to vector<8x128xf32>
    %27 = arith.addf %26, %25 : vector<8x128xf32>
    %28 = arith.divf %26, %27 : vector<8x128xf32>
    %29 = vector.extract_strided_slice %10 {offsets = [0, 256], sizes = [8, 128], strides = [1, 1]} : vector<8x384xf32> to vector<8x128xf32>
    %30 = vector.extract_strided_slice %12 {offsets = [0, 256], sizes = [8, 128], strides = [1, 1]} : vector<8x384xf32> to vector<8x128xf32>
    %31 = arith.addf %30, %6 : vector<8x128xf32>
    %32 = arith.mulf %20, %31 : vector<8x128xf32>
    %33 = arith.addf %29, %32 : vector<8x128xf32>
    %34 = math.tanh %33 : vector<8x128xf32>
    %cst_11 = arith.constant 1.000000e+00 : f32
    %35 = vector.broadcast %cst_11 : f32 to vector<8x128xf32>
    %36 = arith.subf %35, %28 : vector<8x128xf32>
    %37 = arith.mulf %36, %34 : vector<8x128xf32>
    %38 = arith.mulf %28, %7 : vector<8x128xf32>
    %39 = arith.addf %37, %38 : vector<8x128xf32>
    %40 = arith.index_cast %c0_i32_6 : i32 to index
    %c0_12 = arith.constant 0 : index
    %c0_13 = arith.constant 0 : index
    %41 = vector.load %arg6[%40, %c0_12, %c0_13] : memref<8x8x128xf32, #tpu.memory_space<vmem>>, vector<1x8x128xf32>
    %42 = vector.shape_cast %41 : vector<1x8x128xf32> to vector<8x128xf32>
    %43 = vector.shape_cast %39 : vector<8x128xf32> to vector<1x8x128xf32>
    tpu.vector_store %arg6[%40, %c0_12, %c0_13], %43 {strides = array<i32>} : memref<8x8x128xf32, #tpu.memory_space<vmem>>, vector<1x8x128xf32>,
    %c1_i32 = arith.constant 1 : i32
    %44 = arith.index_cast %c1_i32 : i32 to index
    %c0_14 = arith.constant 0 : index
    %c0_15 = arith.constant 0 : index
    %45 = vector.load %arg2[%44, %c0_14, %c0_15] : memref<8x8x384xf32, #tpu.memory_space<vmem>>, vector<1x8x384xf32>
    %46 = vector.shape_cast %45 : vector<1x8x384xf32> to vector<8x384xf32>
    %47 = arith.truncf %39 : vector<8x128xf32> to vector<8x128xbf16>
    %cst_16 = arith.constant dense<0.000000e+00> : vector<8x384xf32>
    %48 = tpu.matmul %47, %3, %cst_16 {dimension_numbers = #tpu.dot_dimension_numbers<[1], [0], [0], [1], [0, 0, 1, 1], [], []>} : vector<8x128xbf16>, vector<128x384xbf16>, vector<8x384xf32> -> vector<8x384xf32>
    %49 = vector.extract_strided_slice %46 {offsets = [0, 0], sizes = [8, 128], strides = [1, 1]} : vector<8x384xf32> to vector<8x128xf32>
    %50 = vector.extract_strided_slice %48 {offsets = [0, 0], sizes = [8, 128], strides = [1, 1]} : vector<8x384xf32> to vector<8x128xf32>
    %51 = arith.addf %49, %50 : vector<8x128xf32>
    %52 = arith.negf %51 : vector<8x128xf32>
    %53 = math.exp %52 : vector<8x128xf32>
    %cst_17 = arith.constant 1.000000e+00 : f32
    %54 = vector.broadcast %cst_17 : f32 to vector<8x128xf32>
    %55 = arith.addf %54, %53 : vector<8x128xf32>
    %56 = arith.divf %54, %55 : vector<8x128xf32>
    %57 = vector.extract_strided_slice %46 {offsets = [0, 128], sizes = [8, 128], strides = [1, 1]} : vector<8x384xf32> to vector<8x128xf32>
    %58 = vector.extract_strided_slice %48 {offsets = [0, 128], sizes = [8, 128], strides = [1, 1]} : vector<8x384xf32> to vector<8x128xf32>
    %59 = arith.addf %57, %58 : vector<8x128xf32>
    %60 = arith.negf %59 : vector<8x128xf32>
    %61 = math.exp %60 : vector<8x128xf32>
    %cst_18 = arith.constant 1.000000e+00 : f32
    %62 = vector.broadcast %cst_18 : f32 to vector<8x128xf32>
    %63 = arith.addf %62, %61 : vector<8x128xf32>
    %64 = arith.divf %62, %63 : vector<8x128xf32>
    %65 = vector.extract_strided_slice %46 {offsets = [0, 256], sizes = [8, 128], strides = [1, 1]} : vector<8x384xf32> to vector<8x128xf32>
    %66 = vector.extract_strided_slice %48 {offsets = [0, 256], sizes = [8, 128], strides = [1, 1]} : vector<8x384xf32> to vector<8x128xf32>
    %67 = arith.addf %66, %6 : vector<8x128xf32>
    %68 = arith.mulf %56, %67 : vector<8x128xf32>
    %69 = arith.addf %65, %68 : vector<8x128xf32>
    %70 = math.tanh %69 : vector<8x128xf32>
    %cst_19 = arith.constant 1.000000e+00 : f32
    %71 = vector.broadcast %cst_19 : f32 to vector<8x128xf32>
    %72 = arith.subf %71, %64 : vector<8x128xf32>
    %73 = arith.mulf %72, %70 : vector<8x128xf32>
    %74 = arith.mulf %64, %39 : vector<8x128xf32>
    %75 = arith.addf %73, %74 : vector<8x128xf32>
    %76 = arith.index_cast %c1_i32 : i32 to index
    %c0_20 = arith.constant 0 : index
    %c0_21 = arith.constant 0 : index
    %77 = vector.load %arg6[%76, %c0_20, %c0_21] : memref<8x8x128xf32, #tpu.memory_space<vmem>>, vector<1x8x128xf32>
    %78 = vector.shape_cast %77 : vector<1x8x128xf32> to vector<8x128xf32>
    %79 = vector.shape_cast %75 : vector<8x128xf32> to vector<1x8x128xf32>
    tpu.vector_store %arg6[%76, %c0_20, %c0_21], %79 {strides = array<i32>} : memref<8x8x128xf32, #tpu.memory_space<vmem>>, vector<1x8x128xf32>,
    %c2_i32 = arith.constant 2 : i32
    %80 = arith.index_cast %c2_i32 : i32 to index
    %c0_22 = arith.constant 0 : index
    %c0_23 = arith.constant 0 : index
    %81 = vector.load %arg2[%80, %c0_22, %c0_23] : memref<8x8x384xf32, #tpu.memory_space<vmem>>, vector<1x8x384xf32>
    %82 = vector.shape_cast %81 : vector<1x8x384xf32> to vector<8x384xf32>
    %83 = arith.truncf %75 : vector<8x128xf32> to vector<8x128xbf16>
    %cst_24 = arith.constant dense<0.000000e+00> : vector<8x384xf32>
    %84 = tpu.matmul %83, %3, %cst_24 {dimension_numbers = #tpu.dot_dimension_numbers<[1], [0], [0], [1], [0, 0, 1, 1], [], []>} : vector<8x128xbf16>, vector<128x384xbf16>, vector<8x384xf32> -> vector<8x384xf32>
    %85 = vector.extract_strided_slice %82 {offsets = [0, 0], sizes = [8, 128], strides = [1, 1]} : vector<8x384xf32> to vector<8x128xf32>
    %86 = vector.extract_strided_slice %84 {offsets = [0, 0], sizes = [8, 128], strides = [1, 1]} : vector<8x384xf32> to vector<8x128xf32>
    %87 = arith.addf %85, %86 : vector<8x128xf32>
    %88 = arith.negf %87 : vector<8x128xf32>
    %89 = math.exp %88 : vector<8x128xf32>
    %cst_25 = arith.constant 1.000000e+00 : f32
    %90 = vector.broadcast %cst_25 : f32 to vector<8x128xf32>
    %91 = arith.addf %90, %89 : vector<8x128xf32>
    %92 = arith.divf %90, %91 : vector<8x128xf32>
    %93 = vector.extract_strided_slice %82 {offsets = [0, 128], sizes = [8, 128], strides = [1, 1]} : vector<8x384xf32> to vector<8x128xf32>
    %94 = vector.extract_strided_slice %84 {offsets = [0, 128], sizes = [8, 128], strides = [1, 1]} : vector<8x384xf32> to vector<8x128xf32>
    %95 = arith.addf %93, %94 : vector<8x128xf32>
    %96 = arith.negf %95 : vector<8x128xf32>
    %97 = math.exp %96 : vector<8x128xf32>
    %cst_26 = arith.constant 1.000000e+00 : f32
    %98 = vector.broadcast %cst_26 : f32 to vector<8x128xf32>
    %99 = arith.addf %98, %97 : vector<8x128xf32>
    %100 = arith.divf %98, %99 : vector<8x128xf32>
    %101 = vector.extract_strided_slice %82 {offsets = [0, 256], sizes = [8, 128], strides = [1, 1]} : vector<8x384xf32> to vector<8x128xf32>
    %102 = vector.extract_strided_slice %84 {offsets = [0, 256], sizes = [8, 128], strides = [1, 1]} : vector<8x384xf32> to vector<8x128xf32>
    %103 = arith.addf %102, %6 : vector<8x128xf32>
    %104 = arith.mulf %92, %103 : vector<8x128xf32>
    %105 = arith.addf %101, %104 : vector<8x128xf32>
    %106 = math.tanh %105 : vector<8x128xf32>
    %cst_27 = arith.constant 1.000000e+00 : f32
    %107 = vector.broadcast %cst_27 : f32 to vector<8x128xf32>
    %108 = arith.subf %107, %100 : vector<8x128xf32>
    %109 = arith.mulf %108, %106 : vector<8x128xf32>
    %110 = arith.mulf %100, %75 : vector<8x128xf32>
    %111 = arith.addf %109, %110 : vector<8x128xf32>
    %112 = arith.index_cast %c2_i32 : i32 to index
    %c0_28 = arith.constant 0 : index
    %c0_29 = arith.constant 0 : index
    %113 = vector.load %arg6[%112, %c0_28, %c0_29] : memref<8x8x128xf32, #tpu.memory_space<vmem>>, vector<1x8x128xf32>
    %114 = vector.shape_cast %113 : vector<1x8x128xf32> to vector<8x128xf32>
    %115 = vector.shape_cast %111 : vector<8x128xf32> to vector<1x8x128xf32>
    tpu.vector_store %arg6[%112, %c0_28, %c0_29], %115 {strides = array<i32>} : memref<8x8x128xf32, #tpu.memory_space<vmem>>, vector<1x8x128xf32>,
    %c3_i32 = arith.constant 3 : i32
    %116 = arith.index_cast %c3_i32 : i32 to index
    %c0_30 = arith.constant 0 : index
    %c0_31 = arith.constant 0 : index
    %117 = vector.load %arg2[%116, %c0_30, %c0_31] : memref<8x8x384xf32, #tpu.memory_space<vmem>>, vector<1x8x384xf32>
    %118 = vector.shape_cast %117 : vector<1x8x384xf32> to vector<8x384xf32>
    %119 = arith.truncf %111 : vector<8x128xf32> to vector<8x128xbf16>
    %cst_32 = arith.constant dense<0.000000e+00> : vector<8x384xf32>
    %120 = tpu.matmul %119, %3, %cst_32 {dimension_numbers = #tpu.dot_dimension_numbers<[1], [0], [0], [1], [0, 0, 1, 1], [], []>} : vector<8x128xbf16>, vector<128x384xbf16>, vector<8x384xf32> -> vector<8x384xf32>
    %121 = vector.extract_strided_slice %118 {offsets = [0, 0], sizes = [8, 128], strides = [1, 1]} : vector<8x384xf32> to vector<8x128xf32>
    %122 = vector.extract_strided_slice %120 {offsets = [0, 0], sizes = [8, 128], strides = [1, 1]} : vector<8x384xf32> to vector<8x128xf32>
    %123 = arith.addf %121, %122 : vector<8x128xf32>
    %124 = arith.negf %123 : vector<8x128xf32>
    %125 = math.exp %124 : vector<8x128xf32>
    %cst_33 = arith.constant 1.000000e+00 : f32
    %126 = vector.broadcast %cst_33 : f32 to vector<8x128xf32>
    %127 = arith.addf %126, %125 : vector<8x128xf32>
    %128 = arith.divf %126, %127 : vector<8x128xf32>
    %129 = vector.extract_strided_slice %118 {offsets = [0, 128], sizes = [8, 128], strides = [1, 1]} : vector<8x384xf32> to vector<8x128xf32>
    %130 = vector.extract_strided_slice %120 {offsets = [0, 128], sizes = [8, 128], strides = [1, 1]} : vector<8x384xf32> to vector<8x128xf32>
    %131 = arith.addf %129, %130 : vector<8x128xf32>
    %132 = arith.negf %131 : vector<8x128xf32>
    %133 = math.exp %132 : vector<8x128xf32>
    %cst_34 = arith.constant 1.000000e+00 : f32
    %134 = vector.broadcast %cst_34 : f32 to vector<8x128xf32>
    %135 = arith.addf %134, %133 : vector<8x128xf32>
    %136 = arith.divf %134, %135 : vector<8x128xf32>
    %137 = vector.extract_strided_slice %118 {offsets = [0, 256], sizes = [8, 128], strides = [1, 1]} : vector<8x384xf32> to vector<8x128xf32>
    %138 = vector.extract_strided_slice %120 {offsets = [0, 256], sizes = [8, 128], strides = [1, 1]} : vector<8x384xf32> to vector<8x128xf32>
    %139 = arith.addf %138, %6 : vector<8x128xf32>
    %140 = arith.mulf %128, %139 : vector<8x128xf32>
    %141 = arith.addf %137, %140 : vector<8x128xf32>
    %142 = math.tanh %141 : vector<8x128xf32>
    %cst_35 = arith.constant 1.000000e+00 : f32
    %143 = vector.broadcast %cst_35 : f32 to vector<8x128xf32>
    %144 = arith.subf %143, %136 : vector<8x128xf32>
    %145 = arith.mulf %144, %142 : vector<8x128xf32>
    %146 = arith.mulf %136, %111 : vector<8x128xf32>
    %147 = arith.addf %145, %146 : vector<8x128xf32>
    %148 = arith.index_cast %c3_i32 : i32 to index
    %c0_36 = arith.constant 0 : index
    %c0_37 = arith.constant 0 : index
    %149 = vector.load %arg6[%148, %c0_36, %c0_37] : memref<8x8x128xf32, #tpu.memory_space<vmem>>, vector<1x8x128xf32>
    %150 = vector.shape_cast %149 : vector<1x8x128xf32> to vector<8x128xf32>
    %151 = vector.shape_cast %147 : vector<8x128xf32> to vector<1x8x128xf32>
    tpu.vector_store %arg6[%148, %c0_36, %c0_37], %151 {strides = array<i32>} : memref<8x8x128xf32, #tpu.memory_space<vmem>>, vector<1x8x128xf32>,
    %c4_i32 = arith.constant 4 : i32
    %152 = arith.index_cast %c4_i32 : i32 to index
    %c0_38 = arith.constant 0 : index
    %c0_39 = arith.constant 0 : index
    %153 = vector.load %arg2[%152, %c0_38, %c0_39] : memref<8x8x384xf32, #tpu.memory_space<vmem>>, vector<1x8x384xf32>
    %154 = vector.shape_cast %153 : vector<1x8x384xf32> to vector<8x384xf32>
    %155 = arith.truncf %147 : vector<8x128xf32> to vector<8x128xbf16>
    %cst_40 = arith.constant dense<0.000000e+00> : vector<8x384xf32>
    %156 = tpu.matmul %155, %3, %cst_40 {dimension_numbers = #tpu.dot_dimension_numbers<[1], [0], [0], [1], [0, 0, 1, 1], [], []>} : vector<8x128xbf16>, vector<128x384xbf16>, vector<8x384xf32> -> vector<8x384xf32>
    %157 = vector.extract_strided_slice %154 {offsets = [0, 0], sizes = [8, 128], strides = [1, 1]} : vector<8x384xf32> to vector<8x128xf32>
    %158 = vector.extract_strided_slice %156 {offsets = [0, 0], sizes = [8, 128], strides = [1, 1]} : vector<8x384xf32> to vector<8x128xf32>
    %159 = arith.addf %157, %158 : vector<8x128xf32>
    %160 = arith.negf %159 : vector<8x128xf32>
    %161 = math.exp %160 : vector<8x128xf32>
    %cst_41 = arith.constant 1.000000e+00 : f32
    %162 = vector.broadcast %cst_41 : f32 to vector<8x128xf32>
    %163 = arith.addf %162, %161 : vector<8x128xf32>
    %164 = arith.divf %162, %163 : vector<8x128xf32>
    %165 = vector.extract_strided_slice %154 {offsets = [0, 128], sizes = [8, 128], strides = [1, 1]} : vector<8x384xf32> to vector<8x128xf32>
    %166 = vector.extract_strided_slice %156 {offsets = [0, 128], sizes = [8, 128], strides = [1, 1]} : vector<8x384xf32> to vector<8x128xf32>
    %167 = arith.addf %165, %166 : vector<8x128xf32>
    %168 = arith.negf %167 : vector<8x128xf32>
    %169 = math.exp %168 : vector<8x128xf32>
    %cst_42 = arith.constant 1.000000e+00 : f32
    %170 = vector.broadcast %cst_42 : f32 to vector<8x128xf32>
    %171 = arith.addf %170, %169 : vector<8x128xf32>
    %172 = arith.divf %170, %171 : vector<8x128xf32>
    %173 = vector.extract_strided_slice %154 {offsets = [0, 256], sizes = [8, 128], strides = [1, 1]} : vector<8x384xf32> to vector<8x128xf32>
    %174 = vector.extract_strided_slice %156 {offsets = [0, 256], sizes = [8, 128], strides = [1, 1]} : vector<8x384xf32> to vector<8x128xf32>
    %175 = arith.addf %174, %6 : vector<8x128xf32>
    %176 = arith.mulf %164, %175 : vector<8x128xf32>
    %177 = arith.addf %173, %176 : vector<8x128xf32>
    %178 = math.tanh %177 : vector<8x128xf32>
    %cst_43 = arith.constant 1.000000e+00 : f32
    %179 = vector.broadcast %cst_43 : f32 to vector<8x128xf32>
    %180 = arith.subf %179, %172 : vector<8x128xf32>
    %181 = arith.mulf %180, %178 : vector<8x128xf32>
    %182 = arith.mulf %172, %147 : vector<8x128xf32>
    %183 = arith.addf %181, %182 : vector<8x128xf32>
    %184 = arith.index_cast %c4_i32 : i32 to index
    %c0_44 = arith.constant 0 : index
    %c0_45 = arith.constant 0 : index
    %185 = vector.load %arg6[%184, %c0_44, %c0_45] : memref<8x8x128xf32, #tpu.memory_space<vmem>>, vector<1x8x128xf32>
    %186 = vector.shape_cast %185 : vector<1x8x128xf32> to vector<8x128xf32>
    %187 = vector.shape_cast %183 : vector<8x128xf32> to vector<1x8x128xf32>
    tpu.vector_store %arg6[%184, %c0_44, %c0_45], %187 {strides = array<i32>} : memref<8x8x128xf32, #tpu.memory_space<vmem>>, vector<1x8x128xf32>,
    %c5_i32 = arith.constant 5 : i32
    %188 = arith.index_cast %c5_i32 : i32 to index
    %c0_46 = arith.constant 0 : index
    %c0_47 = arith.constant 0 : index
    %189 = vector.load %arg2[%188, %c0_46, %c0_47] : memref<8x8x384xf32, #tpu.memory_space<vmem>>, vector<1x8x384xf32>
    %190 = vector.shape_cast %189 : vector<1x8x384xf32> to vector<8x384xf32>
    %191 = arith.truncf %183 : vector<8x128xf32> to vector<8x128xbf16>
    %cst_48 = arith.constant dense<0.000000e+00> : vector<8x384xf32>
    %192 = tpu.matmul %191, %3, %cst_48 {dimension_numbers = #tpu.dot_dimension_numbers<[1], [0], [0], [1], [0, 0, 1, 1], [], []>} : vector<8x128xbf16>, vector<128x384xbf16>, vector<8x384xf32> -> vector<8x384xf32>
    %193 = vector.extract_strided_slice %190 {offsets = [0, 0], sizes = [8, 128], strides = [1, 1]} : vector<8x384xf32> to vector<8x128xf32>
    %194 = vector.extract_strided_slice %192 {offsets = [0, 0], sizes = [8, 128], strides = [1, 1]} : vector<8x384xf32> to vector<8x128xf32>
    %195 = arith.addf %193, %194 : vector<8x128xf32>
    %196 = arith.negf %195 : vector<8x128xf32>
    %197 = math.exp %196 : vector<8x128xf32>
    %cst_49 = arith.constant 1.000000e+00 : f32
    %198 = vector.broadcast %cst_49 : f32 to vector<8x128xf32>
    %199 = arith.addf %198, %197 : vector<8x128xf32>
    %200 = arith.divf %198, %199 : vector<8x128xf32>
    %201 = vector.extract_strided_slice %190 {offsets = [0, 128], sizes = [8, 128], strides = [1, 1]} : vector<8x384xf32> to vector<8x128xf32>
    %202 = vector.extract_strided_slice %192 {offsets = [0, 128], sizes = [8, 128], strides = [1, 1]} : vector<8x384xf32> to vector<8x128xf32>
    %203 = arith.addf %201, %202 : vector<8x128xf32>
    %204 = arith.negf %203 : vector<8x128xf32>
    %205 = math.exp %204 : vector<8x128xf32>
    %cst_50 = arith.constant 1.000000e+00 : f32
    %206 = vector.broadcast %cst_50 : f32 to vector<8x128xf32>
    %207 = arith.addf %206, %205 : vector<8x128xf32>
    %208 = arith.divf %206, %207 : vector<8x128xf32>
    %209 = vector.extract_strided_slice %190 {offsets = [0, 256], sizes = [8, 128], strides = [1, 1]} : vector<8x384xf32> to vector<8x128xf32>
    %210 = vector.extract_strided_slice %192 {offsets = [0, 256], sizes = [8, 128], strides = [1, 1]} : vector<8x384xf32> to vector<8x128xf32>
    %211 = arith.addf %210, %6 : vector<8x128xf32>
    %212 = arith.mulf %200, %211 : vector<8x128xf32>
    %213 = arith.addf %209, %212 : vector<8x128xf32>
    %214 = math.tanh %213 : vector<8x128xf32>
    %cst_51 = arith.constant 1.000000e+00 : f32
    %215 = vector.broadcast %cst_51 : f32 to vector<8x128xf32>
    %216 = arith.subf %215, %208 : vector<8x128xf32>
    %217 = arith.mulf %216, %214 : vector<8x128xf32>
    %218 = arith.mulf %208, %183 : vector<8x128xf32>
    %219 = arith.addf %217, %218 : vector<8x128xf32>
    %220 = arith.index_cast %c5_i32 : i32 to index
    %c0_52 = arith.constant 0 : index
    %c0_53 = arith.constant 0 : index
    %221 = vector.load %arg6[%220, %c0_52, %c0_53] : memref<8x8x128xf32, #tpu.memory_space<vmem>>, vector<1x8x128xf32>
    %222 = vector.shape_cast %221 : vector<1x8x128xf32> to vector<8x128xf32>
    %223 = vector.shape_cast %219 : vector<8x128xf32> to vector<1x8x128xf32>
    tpu.vector_store %arg6[%220, %c0_52, %c0_53], %223 {strides = array<i32>} : memref<8x8x128xf32, #tpu.memory_space<vmem>>, vector<1x8x128xf32>,
    %c6_i32 = arith.constant 6 : i32
    %224 = arith.index_cast %c6_i32 : i32 to index
    %c0_54 = arith.constant 0 : index
    %c0_55 = arith.constant 0 : index
    %225 = vector.load %arg2[%224, %c0_54, %c0_55] : memref<8x8x384xf32, #tpu.memory_space<vmem>>, vector<1x8x384xf32>
    %226 = vector.shape_cast %225 : vector<1x8x384xf32> to vector<8x384xf32>
    %227 = arith.truncf %219 : vector<8x128xf32> to vector<8x128xbf16>
    %cst_56 = arith.constant dense<0.000000e+00> : vector<8x384xf32>
    %228 = tpu.matmul %227, %3, %cst_56 {dimension_numbers = #tpu.dot_dimension_numbers<[1], [0], [0], [1], [0, 0, 1, 1], [], []>} : vector<8x128xbf16>, vector<128x384xbf16>, vector<8x384xf32> -> vector<8x384xf32>
    %229 = vector.extract_strided_slice %226 {offsets = [0, 0], sizes = [8, 128], strides = [1, 1]} : vector<8x384xf32> to vector<8x128xf32>
    %230 = vector.extract_strided_slice %228 {offsets = [0, 0], sizes = [8, 128], strides = [1, 1]} : vector<8x384xf32> to vector<8x128xf32>
    %231 = arith.addf %229, %230 : vector<8x128xf32>
    %232 = arith.negf %231 : vector<8x128xf32>
    %233 = math.exp %232 : vector<8x128xf32>
    %cst_57 = arith.constant 1.000000e+00 : f32
    %234 = vector.broadcast %cst_57 : f32 to vector<8x128xf32>
    %235 = arith.addf %234, %233 : vector<8x128xf32>
    %236 = arith.divf %234, %235 : vector<8x128xf32>
    %237 = vector.extract_strided_slice %226 {offsets = [0, 128], sizes = [8, 128], strides = [1, 1]} : vector<8x384xf32> to vector<8x128xf32>
    %238 = vector.extract_strided_slice %228 {offsets = [0, 128], sizes = [8, 128], strides = [1, 1]} : vector<8x384xf32> to vector<8x128xf32>
    %239 = arith.addf %237, %238 : vector<8x128xf32>
    %240 = arith.negf %239 : vector<8x128xf32>
    %241 = math.exp %240 : vector<8x128xf32>
    %cst_58 = arith.constant 1.000000e+00 : f32
    %242 = vector.broadcast %cst_58 : f32 to vector<8x128xf32>
    %243 = arith.addf %242, %241 : vector<8x128xf32>
    %244 = arith.divf %242, %243 : vector<8x128xf32>
    %245 = vector.extract_strided_slice %226 {offsets = [0, 256], sizes = [8, 128], strides = [1, 1]} : vector<8x384xf32> to vector<8x128xf32>
    %246 = vector.extract_strided_slice %228 {offsets = [0, 256], sizes = [8, 128], strides = [1, 1]} : vector<8x384xf32> to vector<8x128xf32>
    %247 = arith.addf %246, %6 : vector<8x128xf32>
    %248 = arith.mulf %236, %247 : vector<8x128xf32>
    %249 = arith.addf %245, %248 : vector<8x128xf32>
    %250 = math.tanh %249 : vector<8x128xf32>
    %cst_59 = arith.constant 1.000000e+00 : f32
    %251 = vector.broadcast %cst_59 : f32 to vector<8x128xf32>
    %252 = arith.subf %251, %244 : vector<8x128xf32>
    %253 = arith.mulf %252, %250 : vector<8x128xf32>
    %254 = arith.mulf %244, %219 : vector<8x128xf32>
    %255 = arith.addf %253, %254 : vector<8x128xf32>
    %256 = arith.index_cast %c6_i32 : i32 to index
    %c0_60 = arith.constant 0 : index
    %c0_61 = arith.constant 0 : index
    %257 = vector.load %arg6[%256, %c0_60, %c0_61] : memref<8x8x128xf32, #tpu.memory_space<vmem>>, vector<1x8x128xf32>
    %258 = vector.shape_cast %257 : vector<1x8x128xf32> to vector<8x128xf32>
    %259 = vector.shape_cast %255 : vector<8x128xf32> to vector<1x8x128xf32>
    tpu.vector_store %arg6[%256, %c0_60, %c0_61], %259 {strides = array<i32>} : memref<8x8x128xf32, #tpu.memory_space<vmem>>, vector<1x8x128xf32>,
    %c7_i32 = arith.constant 7 : i32
    %260 = arith.index_cast %c7_i32 : i32 to index
    %c0_62 = arith.constant 0 : index
    %c0_63 = arith.constant 0 : index
    %261 = vector.load %arg2[%260, %c0_62, %c0_63] : memref<8x8x384xf32, #tpu.memory_space<vmem>>, vector<1x8x384xf32>
    %262 = vector.shape_cast %261 : vector<1x8x384xf32> to vector<8x384xf32>
    %263 = arith.truncf %255 : vector<8x128xf32> to vector<8x128xbf16>
    %cst_64 = arith.constant dense<0.000000e+00> : vector<8x384xf32>
    %264 = tpu.matmul %263, %3, %cst_64 {dimension_numbers = #tpu.dot_dimension_numbers<[1], [0], [0], [1], [0, 0, 1, 1], [], []>} : vector<8x128xbf16>, vector<128x384xbf16>, vector<8x384xf32> -> vector<8x384xf32>
    %265 = vector.extract_strided_slice %262 {offsets = [0, 0], sizes = [8, 128], strides = [1, 1]} : vector<8x384xf32> to vector<8x128xf32>
    %266 = vector.extract_strided_slice %264 {offsets = [0, 0], sizes = [8, 128], strides = [1, 1]} : vector<8x384xf32> to vector<8x128xf32>
    %267 = arith.addf %265, %266 : vector<8x128xf32>
    %268 = arith.negf %267 : vector<8x128xf32>
    %269 = math.exp %268 : vector<8x128xf32>
    %cst_65 = arith.constant 1.000000e+00 : f32
    %270 = vector.broadcast %cst_65 : f32 to vector<8x128xf32>
    %271 = arith.addf %270, %269 : vector<8x128xf32>
    %272 = arith.divf %270, %271 : vector<8x128xf32>
    %273 = vector.extract_strided_slice %262 {offsets = [0, 128], sizes = [8, 128], strides = [1, 1]} : vector<8x384xf32> to vector<8x128xf32>
    %274 = vector.extract_strided_slice %264 {offsets = [0, 128], sizes = [8, 128], strides = [1, 1]} : vector<8x384xf32> to vector<8x128xf32>
    %275 = arith.addf %273, %274 : vector<8x128xf32>
    %276 = arith.negf %275 : vector<8x128xf32>
    %277 = math.exp %276 : vector<8x128xf32>
    %cst_66 = arith.constant 1.000000e+00 : f32
    %278 = vector.broadcast %cst_66 : f32 to vector<8x128xf32>
    %279 = arith.addf %278, %277 : vector<8x128xf32>
    %280 = arith.divf %278, %279 : vector<8x128xf32>
    %281 = vector.extract_strided_slice %262 {offsets = [0, 256], sizes = [8, 128], strides = [1, 1]} : vector<8x384xf32> to vector<8x128xf32>
    %282 = vector.extract_strided_slice %264 {offsets = [0, 256], sizes = [8, 128], strides = [1, 1]} : vector<8x384xf32> to vector<8x128xf32>
    %283 = arith.addf %282, %6 : vector<8x128xf32>
    %284 = arith.mulf %272, %283 : vector<8x128xf32>
    %285 = arith.addf %281, %284 : vector<8x128xf32>
    %286 = math.tanh %285 : vector<8x128xf32>
    %cst_67 = arith.constant 1.000000e+00 : f32
    %287 = vector.broadcast %cst_67 : f32 to vector<8x128xf32>
    %288 = arith.subf %287, %280 : vector<8x128xf32>
    %289 = arith.mulf %288, %286 : vector<8x128xf32>
    %290 = arith.mulf %280, %255 : vector<8x128xf32>
    %291 = arith.addf %289, %290 : vector<8x128xf32>
    %292 = arith.index_cast %c7_i32 : i32 to index
    %c0_68 = arith.constant 0 : index
    %c0_69 = arith.constant 0 : index
    %293 = vector.load %arg6[%292, %c0_68, %c0_69] : memref<8x8x128xf32, #tpu.memory_space<vmem>>, vector<1x8x128xf32>
    %294 = vector.shape_cast %293 : vector<1x8x128xf32> to vector<8x128xf32>
    %295 = vector.shape_cast %291 : vector<8x128xf32> to vector<1x8x128xf32>
    tpu.vector_store %arg6[%292, %c0_68, %c0_69], %295 {strides = array<i32>} : memref<8x8x128xf32, #tpu.memory_space<vmem>>, vector<1x8x128xf32>,
    %c8_i32 = arith.constant 8 : i32
    %c0_70 = arith.constant 0 : index
    %c0_71 = arith.constant 0 : index
    %296 = vector.load %arg7[%c0_70, %c0_71] : memref<8x128xf32, #tpu.memory_space<vmem>>, vector<8x128xf32>
    tpu.vector_store %arg7[%c0_70, %c0_71], %291 {strides = array<i32>} : memref<8x128xf32, #tpu.memory_space<vmem>>, vector<8x128xf32>,
    return
  }
  func.func @transform_0(%arg0: i32, %arg1: i32) -> (i32, i32, i32) {
    %c0_i32 = arith.constant 0 : i32
    %c0_i32_0 = arith.constant 0 : i32
    return %arg1, %arg0, %c0_i32 : i32, i32, i32
  }
  func.func @transform_1(%arg0: i32, %arg1: i32) -> (i32, i32) {
    %c0_i32 = arith.constant 0 : i32
    %c0_i32_0 = arith.constant 0 : i32
    return %arg0, %c0_i32 : i32, i32
  }
  func.func @transform_2(%arg0: i32, %arg1: i32) -> (i32, i32) {
    %c0_i32 = arith.constant 0 : i32
    %c0_i32_0 = arith.constant 0 : i32
    %c0_i32_1 = arith.constant 0 : i32
    return %c0_i32, %c0_i32_0 : i32, i32
  }
  func.func @transform_3(%arg0: i32, %arg1: i32) -> (i32, i32) {
    %c0_i32 = arith.constant 0 : i32
    %c0_i32_0 = arith.constant 0 : i32
    %c0_i32_1 = arith.constant 0 : i32
    return %c0_i32, %c0_i32_0 : i32, i32
  }
  func.func @transform_4(%arg0: i32, %arg1: i32) -> (i32, i32, i32) {
    %c0_i32 = arith.constant 0 : i32
    %c0_i32_0 = arith.constant 0 : i32
    return %arg1, %arg0, %c0_i32 : i32, i32, i32
  }
}

</mosaic_0001>

<llo_original>
// kernel: tpu_custom_call.1
$region0: #{tpu_custom_call.1}
  #allocation0 [shape = 'u32[]', space=smem, size = 0x4, offset = 0x4, fixed_abs, tag = 'smem constant byte address 0x4 - core index']
  #allocation1 [shape = 'u32[144,128]{1,0:T(1,128)}', space=vmem, size = 0x12000, scoped, tag = 'internal scratch']
  #allocation2 [shape = 'f32[8,128]{1,0:T(8,128)}', space=vmem, size = 0x1000, scoped, tag = 'scratch operand']
  %s0 = inlined_call_operand.hbm [shape: f32[8,8,384], index: 0, kind: input, shape index: {}]
  %s1 = inlined_call_operand.hbm [shape: f32[8,128], index: 1, kind: input, shape index: {}]
  %s2 = inlined_call_operand.hbm [shape: bf16[128,384], index: 2, kind: input, shape index: {}]
  %s3 = inlined_call_operand.hbm [shape: f32[1,128], index: 3, kind: input, shape index: {}]
  %s4 = inlined_call_operand.hbm [shape: f32[8,8,128], index: 4, kind: output, shape index: {}]
  %s5 = sld [smem:[#allocation0]]
  $region46: #{tpu_custom_call.1} parent=0
    _
  %s7 = ssub.s32 1, %s5
  %s8 = scalar_select 0, %s7, %s5
  $region1: #{tpu_custom_call.1} parent=0
    #allocation3 [shape = 'u8[98304]{0}', space=vmem, size = 0x18000, scoped, tag = 'input window, operand 0, single buffered']
    #allocation4 [shape = 's32[1]{0}', space=sflag, size = 0x4, scoped, tag = 'scoped memory for tpu_custom_call.1']
    #allocation5 [shape = 's32[1]{0}', space=sflag, size = 0x4, scoped, tag = 'scoped memory for tpu_custom_call.1']
    #allocation6 [shape = 'u8[4096]{0}', space=vmem, size = 0x1000, scoped, tag = 'input window, operand 1, single buffered']
    #allocation7 [shape = 's32[1]{0}', space=sflag, size = 0x4, scoped, tag = 'scoped memory for tpu_custom_call.1']
    #allocation8 [shape = 'u8[98304]{0}', space=vmem, size = 0x18000, scoped, tag = 'input window, operand 2, single buffered']
    #allocation9 [shape = 'u8[512]{0}', space=vmem, size = 0x400, scoped, tag = 'input window, operand 3, single buffered']
    #allocation10 [shape = 's32[1]{0}', space=sflag, size = 0x4, scoped, tag = 'scoped memory for tpu_custom_call.1']
    #allocation11 [shape = 'u8[32768]{0}', space=vmem, size = 0x8000, scoped, tag = 'output window, operand 0, single buffered']
    %9 = vsyncpa [#allocation4], 0
    %10 = vsyncpa [#allocation7], 0
    %11 = vsyncpa [#allocation10], 0
    %12 = vsyncpa [#allocation5], 0
    // Predicated region
    $region2: #{tpu_custom_call.1} parent=1 // pred_check
      _
    $region3: #{tpu_custom_call.1} parent=1 // pred_check_branch
      %14 = sbr.rel (0) target = $region5
    $region4: #{tpu_custom_call.1} parent=1 // pred_region
      %s16 = ssub.s32 3072, 3072
      %17 = vsyncadd [#allocation4], %s16
      %s18 = sshll.u32 [#allocation3], 4
      %s19 = int_to_ptr.vmem [resolvable:$true] %s18
      %24 = dma.hbm_to_vmem [thread:$0]  %s0, 3072, %s19, [#allocation4], 384, 384, 24
    $region5: #{tpu_custom_call.1} parent=1 // pred_fallthru
      _
    // Predicated region
    $region6: #{tpu_custom_call.1} parent=1 // pred_check
      _
    $region7: #{tpu_custom_call.1} parent=1 // pred_check_branch
      %26 = sbr.rel (0) target = $region9
    $region8: #{tpu_custom_call.1} parent=1 // pred_region
      %s28 = ssub.s32 128, 128
      %29 = vsyncadd [#allocation7], %s28
      %s31 = sshll.u32 [#allocation6], 4
      %s32 = int_to_ptr.vmem [resolvable:$true] %s31
      %34 = dma.hbm_to_vmem [thread:$0]  %s1, 128, %s32, [#allocation7]
    $region9: #{tpu_custom_call.1} parent=1 // pred_fallthru
      _
    // Predicated region
    $region10: #{tpu_custom_call.1} parent=1 // pred_check
      _
    $region11: #{tpu_custom_call.1} parent=1 // pred_check_branch
      %36 = sbr.rel (0) target = $region13
    $region12: #{tpu_custom_call.1} parent=1 // pred_region
      %s38 = ssub.s32 3072, 3072
      %39 = vsyncadd [#allocation7], %s38
      %s40 = sshll.u32 [#allocation8], 4
      %s41 = int_to_ptr.vmem [resolvable:$true] %s40
      %46 = dma.hbm_to_vmem [thread:$0]  %s2, 3072, %s41, [#allocation7], 192, 192, 12
    $region13: #{tpu_custom_call.1} parent=1 // pred_fallthru
      _
    // Predicated region
    $region14: #{tpu_custom_call.1} parent=1 // pred_check
      _
    $region15: #{tpu_custom_call.1} parent=1 // pred_check_branch
      %48 = sbr.rel (0) target = $region17
    $region16: #{tpu_custom_call.1} parent=1 // pred_region
      %s50 = ssub.s32 16, 16
      %51 = vsyncadd [#allocation10], %s50
      %s53 = sshll.u32 [#allocation9], 4
      %s54 = int_to_ptr.vmem [resolvable:$true] %s53
      %56 = dma.hbm_to_vmem [thread:$0]  %s3, 16, %s54, [#allocation10]
    $region17: #{tpu_custom_call.1} parent=1 // pred_fallthru
      _
    // Predicated region
    $region18: #{tpu_custom_call.1} parent=1 // pred_check
      _
    $region19: #{tpu_custom_call.1} parent=1 // pred_check_branch
      %58 = sbr.rel (0) target = $region21
    $region20: #{tpu_custom_call.1} parent=1 // pred_region
      %59 = dma.done [#allocation4], 3072
    $region21: #{tpu_custom_call.1} parent=1 // pred_fallthru
      _
    // Predicated region
    $region22: #{tpu_custom_call.1} parent=1 // pred_check
      _
    $region23: #{tpu_custom_call.1} parent=1 // pred_check_branch
      %61 = sbr.rel (0) target = $region25
    $region24: #{tpu_custom_call.1} parent=1 // pred_region
      %62 = dma.done [#allocation7], 128
    $region25: #{tpu_custom_call.1} parent=1 // pred_fallthru
      _
    // Predicated region
    $region26: #{tpu_custom_call.1} parent=1 // pred_check
      _
    $region27: #{tpu_custom_call.1} parent=1 // pred_check_branch
      %64 = sbr.rel (0) target = $region29
    $region28: #{tpu_custom_call.1} parent=1 // pred_region
      %65 = dma.done [#allocation7], 3072
    $region29: #{tpu_custom_call.1} parent=1 // pred_fallthru
      _
    // Predicated region
    $region30: #{tpu_custom_call.1} parent=1 // pred_check
      _
    $region31: #{tpu_custom_call.1} parent=1 // pred_check_branch
      %67 = sbr.rel (0) target = $region33
    $region32: #{tpu_custom_call.1} parent=1 // pred_region
      %68 = dma.done [#allocation10], 16
    $region33: #{tpu_custom_call.1} parent=1 // pred_fallthru
      _
    %p70 = scmp.eq.s32.totalorder 0, 0
    // Predicated region
    $region34: #{tpu_custom_call.1} parent=1 // pred_check
      %p71 = pneg %p70
    $region35: #{tpu_custom_call.1} parent=1 // pred_check_branch
      %73 = sbr.rel (%p71) target = $region37
    $region36: #{tpu_custom_call.1} parent=1 // pred_region
      %v74 = vld [vmem:[#allocation6] sm:$0xff]
      %75 = vst [vmem:[#allocation2] sm:$0xff] %v74
    $region37: #{tpu_custom_call.1} parent=1 // pred_fallthru
      _
    %v76 = vld [vmem:[#allocation8] sm:$0xff]
    %v77 = vld [vmem:[#allocation8 + $0x8] sm:$0xf]
    %v78 = vld [vmem:[#allocation8 + $0xc] sm:$0xff]
    %v79 = vld [vmem:[#allocation8 + $0x14] sm:$0xf]
    %v80 = vld [vmem:[#allocation8 + $0x18] sm:$0xff]
    %v81 = vld [vmem:[#allocation8 + $0x20] sm:$0xf]
    %v82 = vld [vmem:[#allocation8 + $0x24] sm:$0xff]
    %v83 = vld [vmem:[#allocation8 + $0x2c] sm:$0xf]
    %v84 = vld [vmem:[#allocation8 + $0x30] sm:$0xff]
    %v85 = vld [vmem:[#allocation8 + $0x38] sm:$0xf]
    %v86 = vld [vmem:[#allocation8 + $0x3c] sm:$0xff]
    %v87 = vld [vmem:[#allocation8 + $0x44] sm:$0xf]
    %v88 = vld [vmem:[#allocation8 + $0x48] sm:$0xff]
    %v89 = vld [vmem:[#allocation8 + $0x50] sm:$0xf]
    %v90 = vld [vmem:[#allocation8 + $0x54] sm:$0xff]
    %v91 = vld [vmem:[#allocation8 + $0x5c] sm:$0xf]
    %v92 = vld [vmem:[#allocation8 + $0x60] sm:$0xff]
    %v93 = vld [vmem:[#allocation8 + $0x68] sm:$0xf]
    %v94 = vld [vmem:[#allocation8 + $0x6c] sm:$0xff]
    %v95 = vld [vmem:[#allocation8 + $0x74] sm:$0xf]
    %v96 = vld [vmem:[#allocation8 + $0x78] sm:$0xff]
    %v97 = vld [vmem:[#allocation8 + $0x80] sm:$0xf]
    %v98 = vld [vmem:[#allocation8 + $0x84] sm:$0xff]
    %v99 = vld [vmem:[#allocation8 + $0x8c] sm:$0xf]
    %v100 = vld [vmem:[#allocation8 + $0x90] sm:$0xff]
    %v101 = vld [vmem:[#allocation8 + $0x98] sm:$0xf]
    %v102 = vld [vmem:[#allocation8 + $0x9c] sm:$0xff]
    %v103 = vld [vmem:[#allocation8 + $0xa4] sm:$0xf]
    %v104 = vld [vmem:[#allocation8 + $0xa8] sm:$0xff]
    %v105 = vld [vmem:[#allocation8 + $0xb0] sm:$0xf]
    %v106 = vld [vmem:[#allocation8 + $0xb4] sm:$0xff]
    %v107 = vld [vmem:[#allocation8 + $0xbc] sm:$0xf]
    %v108 = vld [vmem:[#allocation9] sm:$0x1]
    %v110 = vlaneseq
    %v111 = vshrl.u32 %v110, 7
    %v112 = vsub.s32 0, %v111
    %v113 = vrot.slane %v108, %v112
    %v115 = vld [vmem:[#allocation2] sm:$0xff]
    %v116 = vld [vmem:[#allocation3] sm:$0xff]
    %v117 = vld [vmem:[#allocation3 + $0x8] sm:$0xff]
    %v118 = vld [vmem:[#allocation3 + $0x10] sm:$0xff]
    %v119 = vpack.c.bf16 %v115, %v115
    %v152 = vunpack.c.l.b16 %v76
    %v153 = vunpack.c.h.b16 %v76
    %v154 = vunpack.c.l.b16 %v77
    %v155 = vunpack.c.l.b16 %v78
    %v156 = vunpack.c.h.b16 %v78
    %v157 = vunpack.c.l.b16 %v79
    %v158 = vunpack.c.l.b16 %v80
    %v159 = vunpack.c.h.b16 %v80
    %v160 = vunpack.c.l.b16 %v81
    %v161 = vunpack.c.l.b16 %v82
    %v162 = vunpack.c.h.b16 %v82
    %v163 = vunpack.c.l.b16 %v83
    %v164 = vunpack.c.l.b16 %v84
    %v165 = vunpack.c.h.b16 %v84
    %v166 = vunpack.c.l.b16 %v85
    %v167 = vunpack.c.l.b16 %v86
    %v168 = vunpack.c.h.b16 %v86
    %v169 = vunpack.c.l.b16 %v87
    %v170 = vunpack.c.l.b16 %v88
    %v171 = vunpack.c.h.b16 %v88
    %v172 = vunpack.c.l.b16 %v89
    %v173 = vunpack.c.l.b16 %v90
    %v174 = vunpack.c.h.b16 %v90
    %v175 = vunpack.c.l.b16 %v91
    %v176 = vunpack.c.l.b16 %v92
    %v177 = vunpack.c.h.b16 %v92
    %v178 = vunpack.c.l.b16 %v93
    %v179 = vunpack.c.l.b16 %v94
    %v180 = vunpack.c.h.b16 %v94
    %v181 = vunpack.c.l.b16 %v95
    %v182 = vunpack.c.l.b16 %v96
    %v183 = vunpack.c.h.b16 %v96
    %v184 = vunpack.c.l.b16 %v97
    %v185 = vunpack.c.l.b16 %v98
    %v186 = vunpack.c.h.b16 %v98
    %v187 = vunpack.c.l.b16 %v99
    %v188 = vunpack.c.l.b16 %v100
    %v189 = vunpack.c.h.b16 %v100
    %v190 = vunpack.c.l.b16 %v101
    %v191 = vunpack.c.l.b16 %v102
    %v192 = vunpack.c.h.b16 %v102
    %v193 = vunpack.c.l.b16 %v103
    %v194 = vunpack.c.l.b16 %v104
    %v195 = vunpack.c.h.b16 %v104
    %v196 = vunpack.c.l.b16 %v105
    %v197 = vunpack.c.l.b16 %v106
    %v198 = vunpack.c.h.b16 %v106
    %v199 = vunpack.c.l.b16 %v107
    %v200 = vpack.c.b16 %v155, %v152
    %v201 = vpack.c.b16 %v156, %v153
    %v202 = vpack.c.b16 %v157, %v154
    %v203 = vpack.c.b16 %v161, %v158
    %v204 = vpack.c.b16 %v162, %v159
    %v205 = vpack.c.b16 %v163, %v160
    %v206 = vpack.c.b16 %v167, %v164
    %v207 = vpack.c.b16 %v168, %v165
    %v208 = vpack.c.b16 %v169, %v166
    %v209 = vpack.c.b16 %v173, %v170
    %v210 = vpack.c.b16 %v174, %v171
    %v211 = vpack.c.b16 %v175, %v172
    %v212 = vpack.c.b16 %v179, %v176
    %v213 = vpack.c.b16 %v180, %v177
    %v214 = vpack.c.b16 %v181, %v178
    %v215 = vpack.c.b16 %v185, %v182
    %v216 = vpack.c.b16 %v186, %v183
    %v217 = vpack.c.b16 %v187, %v184
    %v218 = vpack.c.b16 %v191, %v188
    %v219 = vpack.c.b16 %v192, %v189
    %v220 = vpack.c.b16 %v193, %v190
    %v221 = vpack.c.b16 %v197, %v194
    %v222 = vpack.c.b16 %v198, %v195
    %v223 = vpack.c.b16 %v199, %v196
    %248 = vmatprep.subr.bf16.mxu0 %v201
    %249 = vmatpush1.bf16.msra.mxu0 %v200
    %250 = vmatprep.subr.bf16.mxu0 %v204
    %251 = vmatpush1.bf16.msra.mxu0 %v203
    %252 = vmatprep.subr.bf16.mxu0 %v207
    %253 = vmatpush1.bf16.msra.mxu0 %v206
    %254 = vmatprep.subr.bf16.mxu0 %v210
    %255 = vmatpush1.bf16.msra.mxu0 %v209
    %256 = vmatprep.subr.bf16.mxu0 %v213
    %257 = vmatpush1.bf16.msra.mxu0 %v212
    %258 = vmatprep.subr.bf16.mxu0 %v216
    %259 = vmatpush1.bf16.msra.mxu0 %v215
    %260 = vmatprep.subr.bf16.mxu0 %v219
    %261 = vmatpush1.bf16.msra.mxu0 %v218
    %262 = vmatprep.subr.bf16.mxu0 %v222
    %263 = vmatpush1.bf16.msra.mxu0 %v221
    %264 = vmatprep.subr.bf16.mxu0 0
    %265 = vmatpush1.bf16.msra.mxu0 0
    %266 = vmatprep.subr.bf16.mxu0 0
    %267 = vmatpush1.bf16.msra.mxu0 0
    %268 = vmatprep.subr.bf16.mxu0 0
    %269 = vmatpush1.bf16.msra.mxu0 0
    %270 = vmatprep.subr.bf16.mxu0 0
    %271 = vmatpush1.bf16.msra.mxu0 0
    %272 = vmatprep.subr.bf16.mxu0 0
    %273 = vmatpush1.bf16.msra.mxu0 0
    %274 = vmatprep.subr.bf16.mxu0 0
    %275 = vmatpush1.bf16.msra.mxu0 0
    %276 = vmatprep.subr.bf16.mxu0 0
    %277 = vmatpush1.bf16.msra.mxu0 0
    %278 = vmatprep.subr.bf16.mxu0 0
    %279 = vmatpush1.bf16.msra.mxu0 0
    %280 = vmatprep.mubr.bf16.mxu0 0
    %281 = vmatmul.mubr.bf16.gmra.mrb[0].mxu0 %v119
    %v282 = vpop.f32.mrb[0].mxu0
    %v283 = vadd.f32 0.0, %v282
    %v284 = vpop.f32.mrb[0].mxu0
    %v285 = vadd.f32 0.0, %v284
    %v286 = vpop.f32.mrb[0].mxu0
    %v287 = vpop.f32.mrb[0].mxu0
    %288 = vdwg.mxu0
    %289 = vmatprep.subr.bf16.mxu0 0
    %290 = vmatpush1.bf16.msra.mxu0 %v202
    %291 = vmatprep.subr.bf16.mxu0 0
    %292 = vmatpush1.bf16.msra.mxu0 %v205
    %293 = vmatprep.subr.bf16.mxu0 0
    %294 = vmatpush1.bf16.msra.mxu0 %v208
    %295 = vmatprep.subr.bf16.mxu0 0
    %296 = vmatpush1.bf16.msra.mxu0 %v211
    %297 = vmatprep.subr.bf16.mxu0 0
    %298 = vmatpush1.bf16.msra.mxu0 %v214
    %299 = vmatprep.subr.bf16.mxu0 0
    %300 = vmatpush1.bf16.msra.mxu0 %v217
    %301 = vmatprep.subr.bf16.mxu0 0
    %302 = vmatpush1.bf16.msra.mxu0 %v220
    %303 = vmatprep.subr.bf16.mxu0 0
    %304 = vmatpush1.bf16.msra.mxu0 %v223
    %305 = vmatprep.subr.bf16.mxu0 0
    %306 = vmatpush1.bf16.msra.mxu0 0
    %307 = vmatprep.subr.bf16.mxu0 0
    %308 = vmatpush1.bf16.msra.mxu0 0
    %309 = vmatprep.subr.bf16.mxu0 0
    %310 = vmatpush1.bf16.msra.mxu0 0
    %311 = vmatprep.subr.bf16.mxu0 0
    %312 = vmatpush1.bf16.msra.mxu0 0
    %313 = vmatprep.subr.bf16.mxu0 0
    %314 = vmatpush1.bf16.msra.mxu0 0
    %315 = vmatprep.subr.bf16.mxu0 0
    %316 = vmatpush1.bf16.msra.mxu0 0
    %317 = vmatprep.subr.bf16.mxu0 0
    %318 = vmatpush1.bf16.msra.mxu0 0
    %319 = vmatprep.subr.bf16.mxu0 0
    %320 = vmatpush1.bf16.msra.mxu0 0
    %321 = vmatprep.mubr.bf16.mxu0 0
    %322 = vmatmul.mubr.bf16.gmra.mrb[0].mxu0 %v119
    %v323 = vpop.f32.mrb[0].mxu0
    %v324 = vadd.f32 0.0, %v323
    %v325 = vpop.f32.mrb[0].mxu0
    %v326 = vpop.f32.mrb[0].mxu0
    %v327 = vpop.f32.mrb[0].mxu0
    %328 = vdwg.mxu0
    %v329 = vadd.f32 %v116, %v283
    %v330 = vxor.u32 %v329, 2147483648
    %v331 = vmul.f32 %v330, 1.442695
    %v332 = vpow.pop %v331
    %v333 = vadd.f32 %v332, 1.0
    %v334 = vrcp.pop %v333
    %v335 = vmul.f32 1.0, %v334
    %v336 = vadd.f32 %v117, %v285
    %v337 = vxor.u32 %v336, 2147483648
    %v338 = vmul.f32 %v337, 1.442695
    %v339 = vpow.pop %v338
    %v340 = vadd.f32 %v339, 1.0
    %v341 = vrcp.pop %v340
    %v342 = vmul.f32 1.0, %v341
    %v343 = vadd.f32 %v324, %v113
    %v344 = vmul.f32 %v335, %v343
    %v345 = vadd.f32 %v118, %v344
    %v346 = vtanh.pop %v345
    %v347 = vsub.f32 1.0, %v342
    %v348 = vmul.f32 %v347, %v346
    %v349 = vmul.f32 %v342, %v115
    %v350 = vadd.f32 %v348, %v349
    %351 = vst [vmem:[#allocation11] sm:$0xff] %v350
    %s352 = scalar_lea.vmem [#allocation3], 24
    %v353 = vld [vmem:[%s352] sm:$0xff]
    %v354 = vld [vmem:[%s352 + $0x8] sm:$0xff]
    %v355 = vld [vmem:[%s352 + $0x10] sm:$0xff]
    %v356 = vpack.c.bf16 %v350, %v350
    %357 = vmatprep.subr.bf16.mxu0 %v201
    %358 = vmatpush1.bf16.msra.mxu0 %v200
    %359 = vmatprep.subr.bf16.mxu0 %v204
    %360 = vmatpush1.bf16.msra.mxu0 %v203
    %361 = vmatprep.subr.bf16.mxu0 %v207
    %362 = vmatpush1.bf16.msra.mxu0 %v206
    %363 = vmatprep.subr.bf16.mxu0 %v210
    %364 = vmatpush1.bf16.msra.mxu0 %v209
    %365 = vmatprep.subr.bf16.mxu0 %v213
    %366 = vmatpush1.bf16.msra.mxu0 %v212
    %367 = vmatprep.subr.bf16.mxu0 %v216
    %368 = vmatpush1.bf16.msra.mxu0 %v215
    %369 = vmatprep.subr.bf16.mxu0 %v219
    %370 = vmatpush1.bf16.msra.mxu0 %v218
    %371 = vmatprep.subr.bf16.mxu0 %v222
    %372 = vmatpush1.bf16.msra.mxu0 %v221
    %373 = vmatprep.subr.bf16.mxu0 0
    %374 = vmatpush1.bf16.msra.mxu0 0
    %375 = vmatprep.subr.bf16.mxu0 0
    %376 = vmatpush1.bf16.msra.mxu0 0
    %377 = vmatprep.subr.bf16.mxu0 0
    %378 = vmatpush1.bf16.msra.mxu0 0
    %379 = vmatprep.subr.bf16.mxu0 0
    %380 = vmatpush1.bf16.msra.mxu0 0
    %381 = vmatprep.subr.bf16.mxu0 0
    %382 = vmatpush1.bf16.msra.mxu0 0
    %383 = vmatprep.subr.bf16.mxu0 0
    %384 = vmatpush1.bf16.msra.mxu0 0
    %385 = vmatprep.subr.bf16.mxu0 0
    %386 = vmatpush1.bf16.msra.mxu0 0
    %387 = vmatprep.subr.bf16.mxu0 0
    %388 = vmatpush1.bf16.msra.mxu0 0
    %389 = vmatprep.mubr.bf16.mxu0 0
    %390 = vmatmul.mubr.bf16.gmra.mrb[0].mxu0 %v356
    %v391 = vpop.f32.mrb[0].mxu0
    %v392 = vadd.f32 0.0, %v391
    %v393 = vpop.f32.mrb[0].mxu0
    %v394 = vadd.f32 0.0, %v393
    %v395 = vpop.f32.mrb[0].mxu0
    %v396 = vpop.f32.mrb[0].mxu0
    %397 = vdwg.mxu0
    %398 = vmatprep.subr.bf16.mxu0 0
    %399 = vmatpush1.bf16.msra.mxu0 %v202
    %400 = vmatprep.subr.bf16.mxu0 0
    %401 = vmatpush1.bf16.msra.mxu0 %v205
    %402 = vmatprep.subr.bf16.mxu0 0
    %403 = vmatpush1.bf16.msra.mxu0 %v208
    %404 = vmatprep.subr.bf16.mxu0 0
    %405 = vmatpush1.bf16.msra.mxu0 %v211
    %406 = vmatprep.subr.bf16.mxu0 0
    %407 = vmatpush1.bf16.msra.mxu0 %v214
    %408 = vmatprep.subr.bf16.mxu0 0
    %409 = vmatpush1.bf16.msra.mxu0 %v217
    %410 = vmatprep.subr.bf16.mxu0 0
    %411 = vmatpush1.bf16.msra.mxu0 %v220
    %412 = vmatprep.subr.bf16.mxu0 0
    %413 = vmatpush1.bf16.msra.mxu0 %v223
    %414 = vmatprep.subr.bf16.mxu0 0
    %415 = vmatpush1.bf16.msra.mxu0 0
    %416 = vmatprep.subr.bf16.mxu0 0
    %417 = vmatpush1.bf16.msra.mxu0 0
    %418 = vmatprep.subr.bf16.mxu0 0
    %419 = vmatpush1.bf16.msra.mxu0 0
    %420 = vmatprep.subr.bf16.mxu0 0
    %421 = vmatpush1.bf16.msra.mxu0 0
    %422 = vmatprep.subr.bf16.mxu0 0
    %423 = vmatpush1.bf16.msra.mxu0 0
    %424 = vmatprep.subr.bf16.mxu0 0
    %425 = vmatpush1.bf16.msra.mxu0 0
    %426 = vmatprep.subr.bf16.mxu0 0
    %427 = vmatpush1.bf16.msra.mxu0 0
    %428 = vmatprep.subr.bf16.mxu0 0
    %429 = vmatpush1.bf16.msra.mxu0 0
    %430 = vmatprep.mubr.bf16.mxu0 0
    %431 = vmatmul.mubr.bf16.gmra.mrb[0].mxu0 %v356
    %v432 = vpop.f32.mrb[0].mxu0
    %v433 = vadd.f32 0.0, %v432
    %v434 = vpop.f32.mrb[0].mxu0
    %v435 = vpop.f32.mrb[0].mxu0
    %v436 = vpop.f32.mrb[0].mxu0
    %437 = vdwg.mxu0
    %v438 = vadd.f32 %v353, %v392
    %v439 = vxor.u32 %v438, 2147483648
    %v440 = vmul.f32 %v439, 1.442695
    %v441 = vpow.pop %v440
    %v442 = vadd.f32 %v441, 1.0
    %v443 = vrcp.pop %v442
    %v444 = vmul.f32 1.0, %v443
    %v445 = vadd.f32 %v354, %v394
    %v446 = vxor.u32 %v445, 2147483648
    %v447 = vmul.f32 %v446, 1.442695
    %v448 = vpow.pop %v447
    %v449 = vadd.f32 %v448, 1.0
    %v450 = vrcp.pop %v449
    %v451 = vmul.f32 1.0, %v450
    %v452 = vadd.f32 %v433, %v113
    %v453 = vmul.f32 %v444, %v452
    %v454 = vadd.f32 %v355, %v453
    %v455 = vtanh.pop %v454
    %v456 = vsub.f32 1.0, %v451
    %v457 = vmul.f32 %v456, %v455
    %v458 = vmul.f32 %v451, %v350
    %v459 = vadd.f32 %v457, %v458
    %s460 = scalar_lea.vmem [#allocation11], 8
    %461 = vst [vmem:[%s460] sm:$0xff] %v459
    %s462 = scalar_lea.vmem [#allocation3], 48
    %v463 = vld [vmem:[%s462] sm:$0xff]
    %v464 = vld [vmem:[%s462 + $0x8] sm:$0xff]
    %v465 = vld [vmem:[%s462 + $0x10] sm:$0xff]
    %v466 = vpack.c.bf16 %v459, %v459
    %467 = vmatprep.subr.bf16.mxu0 %v201
    %468 = vmatpush1.bf16.msra.mxu0 %v200
    %469 = vmatprep.subr.bf16.mxu0 %v204
    %470 = vmatpush1.bf16.msra.mxu0 %v203
    %471 = vmatprep.subr.bf16.mxu0 %v207
    %472 = vmatpush1.bf16.msra.mxu0 %v206
    %473 = vmatprep.subr.bf16.mxu0 %v210
    %474 = vmatpush1.bf16.msra.mxu0 %v209
    %475 = vmatprep.subr.bf16.mxu0 %v213
    %476 = vmatpush1.bf16.msra.mxu0 %v212
    %477 = vmatprep.subr.bf16.mxu0 %v216
    %478 = vmatpush1.bf16.msra.mxu0 %v215
    %479 = vmatprep.subr.bf16.mxu0 %v219
    %480 = vmatpush1.bf16.msra.mxu0 %v218
    %481 = vmatprep.subr.bf16.mxu0 %v222
    %482 = vmatpush1.bf16.msra.mxu0 %v221
    %483 = vmatprep.subr.bf16.mxu0 0
    %484 = vmatpush1.bf16.msra.mxu0 0
    %485 = vmatprep.subr.bf16.mxu0 0
    %486 = vmatpush1.bf16.msra.mxu0 0
    %487 = vmatprep.subr.bf16.mxu0 0
    %488 = vmatpush1.bf16.msra.mxu0 0
    %489 = vmatprep.subr.bf16.mxu0 0
    %490 = vmatpush1.bf16.msra.mxu0 0
    %491 = vmatprep.subr.bf16.mxu0 0
    %492 = vmatpush1.bf16.msra.mxu0 0
    %493 = vmatprep.subr.bf16.mxu0 0
    %494 = vmatpush1.bf16.msra.mxu0 0
    %495 = vmatprep.subr.bf16.mxu0 0
    %496 = vmatpush1.bf16.msra.mxu0 0
    %497 = vmatprep.subr.bf16.mxu0 0
    %498 = vmatpush1.bf16.msra.mxu0 0
    %499 = vmatprep.mubr.bf16.mxu0 0
    %500 = vmatmul.mubr.bf16.gmra.mrb[0].mxu0 %v466
    %v501 = vpop.f32.mrb[0].mxu0
    %v502 = vadd.f32 0.0, %v501
    %v503 = vpop.f32.mrb[0].mxu0
    %v504 = vadd.f32 0.0, %v503
    %v505 = vpop.f32.mrb[0].mxu0
    %v506 = vpop.f32.mrb[0].mxu0
    %507 = vdwg.mxu0
    %508 = vmatprep.subr.bf16.mxu0 0
    %509 = vmatpush1.bf16.msra.mxu0 %v202
    %510 = vmatprep.subr.bf16.mxu0 0
    %511 = vmatpush1.bf16.msra.mxu0 %v205
    %512 = vmatprep.subr.bf16.mxu0 0
    %513 = vmatpush1.bf16.msra.mxu0 %v208
    %514 = vmatprep.subr.bf16.mxu0 0
    %515 = vmatpush1.bf16.msra.mxu0 %v211
    %516 = vmatprep.subr.bf16.mxu0 0
    %517 = vmatpush1.bf16.msra.mxu0 %v214
    %518 = vmatprep.subr.bf16.mxu0 0
    %519 = vmatpush1.bf16.msra.mxu0 %v217
    %520 = vmatprep.subr.bf16.mxu0 0
    %521 = vmatpush1.bf16.msra.mxu0 %v220
    %522 = vmatprep.subr.bf16.mxu0 0
    %523 = vmatpush1.bf16.msra.mxu0 %v223
    %524 = vmatprep.subr.bf16.mxu0 0
    %525 = vmatpush1.bf16.msra.mxu0 0
    %526 = vmatprep.subr.bf16.mxu0 0
    %527 = vmatpush1.bf16.msra.mxu0 0
    %528 = vmatprep.subr.bf16.mxu0 0
    %529 = vmatpush1.bf16.msra.mxu0 0
    %530 = vmatprep.subr.bf16.mxu0 0
    %531 = vmatpush1.bf16.msra.mxu0 0
    %532 = vmatprep.subr.bf16.mxu0 0
    %533 = vmatpush1.bf16.msra.mxu0 0
    %534 = vmatprep.subr.bf16.mxu0 0
    %535 = vmatpush1.bf16.msra.mxu0 0
    %536 = vmatprep.subr.bf16.mxu0 0
    %537 = vmatpush1.bf16.msra.mxu0 0
    %538 = vmatprep.subr.bf16.mxu0 0
    %539 = vmatpush1.bf16.msra.mxu0 0
    %540 = vmatprep.mubr.bf16.mxu0 0
    %541 = vmatmul.mubr.bf16.gmra.mrb[0].mxu0 %v466
    %v542 = vpop.f32.mrb[0].mxu0
    %v543 = vadd.f32 0.0, %v542
    %v544 = vpop.f32.mrb[0].mxu0
    %v545 = vpop.f32.mrb[0].mxu0
    %v546 = vpop.f32.mrb[0].mxu0
    %547 = vdwg.mxu0
    %v548 = vadd.f32 %v463, %v502
    %v549 = vxor.u32 %v548, 2147483648
    %v550 = vmul.f32 %v549, 1.442695
    %v551 = vpow.pop %v550
    %v552 = vadd.f32 %v551, 1.0
    %v553 = vrcp.pop %v552
    %v554 = vmul.f32 1.0, %v553
    %v555 = vadd.f32 %v464, %v504
    %v556 = vxor.u32 %v555, 2147483648
    %v557 = vmul.f32 %v556, 1.442695
    %v558 = vpow.pop %v557
    %v559 = vadd.f32 %v558, 1.0
    %v560 = vrcp.pop %v559
    %v561 = vmul.f32 1.0, %v560
    %v562 = vadd.f32 %v543, %v113
    %v563 = vmul.f32 %v554, %v562
    %v564 = vadd.f32 %v465, %v563
    %v565 = vtanh.pop %v564
    %v566 = vsub.f32 1.0, %v561
    %v567 = vmul.f32 %v566, %v565
    %v568 = vmul.f32 %v561, %v459
    %v569 = vadd.f32 %v567, %v568
    %s570 = scalar_lea.vmem [#allocation11], 16
    %571 = vst [vmem:[%s570] sm:$0xff] %v569
    %s572 = scalar_lea.vmem [#allocation3], 72
    %v573 = vld [vmem:[%s572] sm:$0xff]
    %v574 = vld [vmem:[%s572 + $0x8] sm:$0xff]
    %v575 = vld [vmem:[%s572 + $0x10] sm:$0xff]
    %v576 = vpack.c.bf16 %v569, %v569
    %577 = vmatprep.subr.bf16.mxu0 %v201
    %578 = vmatpush1.bf16.msra.mxu0 %v200
    %579 = vmatprep.subr.bf16.mxu0 %v204
    %580 = vmatpush1.bf16.msra.mxu0 %v203
    %581 = vmatprep.subr.bf16.mxu0 %v207
    %582 = vmatpush1.bf16.msra.mxu0 %v206
    %583 = vmatprep.subr.bf16.mxu0 %v210
    %584 = vmatpush1.bf16.msra.mxu0 %v209
    %585 = vmatprep.subr.bf16.mxu0 %v213
    %586 = vmatpush1.bf16.msra.mxu0 %v212
    %587 = vmatprep.subr.bf16.mxu0 %v216
    %588 = vmatpush1.bf16.msra.mxu0 %v215
    %589 = vmatprep.subr.bf16.mxu0 %v219
    %590 = vmatpush1.bf16.msra.mxu0 %v218
    %591 = vmatprep.subr.bf16.mxu0 %v222
    %592 = vmatpush1.bf16.msra.mxu0 %v221
    %593 = vmatprep.subr.bf16.mxu0 0
    %594 = vmatpush1.bf16.msra.mxu0 0
    %595 = vmatprep.subr.bf16.mxu0 0
    %596 = vmatpush1.bf16.msra.mxu0 0
    %597 = vmatprep.subr.bf16.mxu0 0
    %598 = vmatpush1.bf16.msra.mxu0 0
    %599 = vmatprep.subr.bf16.mxu0 0
    %600 = vmatpush1.bf16.msra.mxu0 0
    %601 = vmatprep.subr.bf16.mxu0 0
    %602 = vmatpush1.bf16.msra.mxu0 0
    %603 = vmatprep.subr.bf16.mxu0 0
    %604 = vmatpush1.bf16.msra.mxu0 0
    %605 = vmatprep.subr.bf16.mxu0 0
    %606 = vmatpush1.bf16.msra.mxu0 0
    %607 = vmatprep.subr.bf16.mxu0 0
    %608 = vmatpush1.bf16.msra.mxu0 0
    %609 = vmatprep.mubr.bf16.mxu0 0
    %610 = vmatmul.mubr.bf16.gmra.mrb[0].mxu0 %v576
    %v611 = vpop.f32.mrb[0].mxu0
    %v612 = vadd.f32 0.0, %v611
    %v613 = vpop.f32.mrb[0].mxu0
    %v614 = vadd.f32 0.0, %v613
    %v615 = vpop.f32.mrb[0].mxu0
    %v616 = vpop.f32.mrb[0].mxu0
    %617 = vdwg.mxu0
    %618 = vmatprep.subr.bf16.mxu0 0
    %619 = vmatpush1.bf16.msra.mxu0 %v202
    %620 = vmatprep.subr.bf16.mxu0 0
    %621 = vmatpush1.bf16.msra.mxu0 %v205
    %622 = vmatprep.subr.bf16.mxu0 0
    %623 = vmatpush1.bf16.msra.mxu0 %v208
    %624 = vmatprep.subr.bf16.mxu0 0
    %625 = vmatpush1.bf16.msra.mxu0 %v211
    %626 = vmatprep.subr.bf16.mxu0 0
    %627 = vmatpush1.bf16.msra.mxu0 %v214
    %628 = vmatprep.subr.bf16.mxu0 0
    %629 = vmatpush1.bf16.msra.mxu0 %v217
    %630 = vmatprep.subr.bf16.mxu0 0
    %631 = vmatpush1.bf16.msra.mxu0 %v220
    %632 = vmatprep.subr.bf16.mxu0 0
    %633 = vmatpush1.bf16.msra.mxu0 %v223
    %634 = vmatprep.subr.bf16.mxu0 0
    %635 = vmatpush1.bf16.msra.mxu0 0
    %636 = vmatprep.subr.bf16.mxu0 0
    %637 = vmatpush1.bf16.msra.mxu0 0
    %638 = vmatprep.subr.bf16.mxu0 0
    %639 = vmatpush1.bf16.msra.mxu0 0
    %640 = vmatprep.subr.bf16.mxu0 0
    %641 = vmatpush1.bf16.msra.mxu0 0
    %642 = vmatprep.subr.bf16.mxu0 0
    %643 = vmatpush1.bf16.msra.mxu0 0
    %644 = vmatprep.subr.bf16.mxu0 0
    %645 = vmatpush1.bf16.msra.mxu0 0
    %646 = vmatprep.subr.bf16.mxu0 0
    %647 = vmatpush1.bf16.msra.mxu0 0
    %648 = vmatprep.subr.bf16.mxu0 0
    %649 = vmatpush1.bf16.msra.mxu0 0
    %650 = vmatprep.mubr.bf16.mxu0 0
    %651 = vmatmul.mubr.bf16.gmra.mrb[0].mxu0 %v576
    %v652 = vpop.f32.mrb[0].mxu0
    %v653 = vadd.f32 0.0, %v652
    %v654 = vpop.f32.mrb[0].mxu0
    %v655 = vpop.f32.mrb[0].mxu0
    %v656 = vpop.f32.mrb[0].mxu0
    %657 = vdwg.mxu0
    %v658 = vadd.f32 %v573, %v612
    %v659 = vxor.u32 %v658, 2147483648
    %v660 = vmul.f32 %v659, 1.442695
    %v661 = vpow.pop %v660
    %v662 = vadd.f32 %v661, 1.0
    %v663 = vrcp.pop %v662
    %v664 = vmul.f32 1.0, %v663
    %v665 = vadd.f32 %v574, %v614
    %v666 = vxor.u32 %v665, 2147483648
    %v667 = vmul.f32 %v666, 1.442695
    %v668 = vpow.pop %v667
    %v669 = vadd.f32 %v668, 1.0
    %v670 = vrcp.pop %v669
    %v671 = vmul.f32 1.0, %v670
    %v672 = vadd.f32 %v653, %v113
    %v673 = vmul.f32 %v664, %v672
    %v674 = vadd.f32 %v575, %v673
    %v675 = vtanh.pop %v674
    %v676 = vsub.f32 1.0, %v671
    %v677 = vmul.f32 %v676, %v675
    %v678 = vmul.f32 %v671, %v569
    %v679 = vadd.f32 %v677, %v678
    %s680 = scalar_lea.vmem [#allocation11], 24
    %681 = vst [vmem:[%s680] sm:$0xff] %v679
    %s682 = scalar_lea.vmem [#allocation3], 96
    %v683 = vld [vmem:[%s682] sm:$0xff]
    %v684 = vld [vmem:[%s682 + $0x8] sm:$0xff]
    %v685 = vld [vmem:[%s682 + $0x10] sm:$0xff]
    %v686 = vpack.c.bf16 %v679, %v679
    %687 = vmatprep.subr.bf16.mxu0 %v201
    %688 = vmatpush1.bf16.msra.mxu0 %v200
    %689 = vmatprep.subr.bf16.mxu0 %v204
    %690 = vmatpush1.bf16.msra.mxu0 %v203
    %691 = vmatprep.subr.bf16.mxu0 %v207
    %692 = vmatpush1.bf16.msra.mxu0 %v206
    %693 = vmatprep.subr.bf16.mxu0 %v210
    %694 = vmatpush1.bf16.msra.mxu0 %v209
    %695 = vmatprep.subr.bf16.mxu0 %v213
    %696 = vmatpush1.bf16.msra.mxu0 %v212
    %697 = vmatprep.subr.bf16.mxu0 %v216
    %698 = vmatpush1.bf16.msra.mxu0 %v215
    %699 = vmatprep.subr.bf16.mxu0 %v219
    %700 = vmatpush1.bf16.msra.mxu0 %v218
    %701 = vmatprep.subr.bf16.mxu0 %v222
    %702 = vmatpush1.bf16.msra.mxu0 %v221
    %703 = vmatprep.subr.bf16.mxu0 0
    %704 = vmatpush1.bf16.msra.mxu0 0
    %705 = vmatprep.subr.bf16.mxu0 0
    %706 = vmatpush1.bf16.msra.mxu0 0
    %707 = vmatprep.subr.bf16.mxu0 0
    %708 = vmatpush1.bf16.msra.mxu0 0
    %709 = vmatprep.subr.bf16.mxu0 0
    %710 = vmatpush1.bf16.msra.mxu0 0
    %711 = vmatprep.subr.bf16.mxu0 0
    %712 = vmatpush1.bf16.msra.mxu0 0
    %713 = vmatprep.subr.bf16.mxu0 0
    %714 = vmatpush1.bf16.msra.mxu0 0
    %715 = vmatprep.subr.bf16.mxu0 0
    %716 = vmatpush1.bf16.msra.mxu0 0
    %717 = vmatprep.subr.bf16.mxu0 0
    %718 = vmatpush1.bf16.msra.mxu0 0
    %719 = vmatprep.mubr.bf16.mxu0 0
    %720 = vmatmul.mubr.bf16.gmra.mrb[0].mxu0 %v686
    %v721 = vpop.f32.mrb[0].mxu0
    %v722 = vadd.f32 0.0, %v721
    %v723 = vpop.f32.mrb[0].mxu0
    %v724 = vadd.f32 0.0, %v723
    %v725 = vpop.f32.mrb[0].mxu0
    %v726 = vpop.f32.mrb[0].mxu0
    %727 = vdwg.mxu0
    %728 = vmatprep.subr.bf16.mxu0 0
    %729 = vmatpush1.bf16.msra.mxu0 %v202
    %730 = vmatprep.subr.bf16.mxu0 0
    %731 = vmatpush1.bf16.msra.mxu0 %v205
    %732 = vmatprep.subr.bf16.mxu0 0
    %733 = vmatpush1.bf16.msra.mxu0 %v208
    %734 = vmatprep.subr.bf16.mxu0 0
    %735 = vmatpush1.bf16.msra.mxu0 %v211
    %736 = vmatprep.subr.bf16.mxu0 0
    %737 = vmatpush1.bf16.msra.mxu0 %v214
    %738 = vmatprep.subr.bf16.mxu0 0
    %739 = vmatpush1.bf16.msra.mxu0 %v217
    %740 = vmatprep.subr.bf16.mxu0 0
    %741 = vmatpush1.bf16.msra.mxu0 %v220
    %742 = vmatprep.subr.bf16.mxu0 0
    %743 = vmatpush1.bf16.msra.mxu0 %v223
    %744 = vmatprep.subr.bf16.mxu0 0
    %745 = vmatpush1.bf16.msra.mxu0 0
    %746 = vmatprep.subr.bf16.mxu0 0
    %747 = vmatpush1.bf16.msra.mxu0 0
    %748 = vmatprep.subr.bf16.mxu0 0
    %749 = vmatpush1.bf16.msra.mxu0 0
    %750 = vmatprep.subr.bf16.mxu0 0
    %751 = vmatpush1.bf16.msra.mxu0 0
    %752 = vmatprep.subr.bf16.mxu0 0
    %753 = vmatpush1.bf16.msra.mxu0 0
    %754 = vmatprep.subr.bf16.mxu0 0
    %755 = vmatpush1.bf16.msra.mxu0 0
    %756 = vmatprep.subr.bf16.mxu0 0
    %757 = vmatpush1.bf16.msra.mxu0 0
    %758 = vmatprep.subr.bf16.mxu0 0
    %759 = vmatpush1.bf16.msra.mxu0 0
    %760 = vmatprep.mubr.bf16.mxu0 0
    %761 = vmatmul.mubr.bf16.gmra.mrb[0].mxu0 %v686
    %v762 = vpop.f32.mrb[0].mxu0
    %v763 = vadd.f32 0.0, %v762
    %v764 = vpop.f32.mrb[0].mxu0
    %v765 = vpop.f32.mrb[0].mxu0
    %v766 = vpop.f32.mrb[0].mxu0
    %767 = vdwg.mxu0
    %v768 = vadd.f32 %v683, %v722
    %v769 = vxor.u32 %v768, 2147483648
    %v770 = vmul.f32 %v769, 1.442695
    %v771 = vpow.pop %v770
    %v772 = vadd.f32 %v771, 1.0
    %v773 = vrcp.pop %v772
    %v774 = vmul.f32 1.0, %v773
    %v775 = vadd.f32 %v684, %v724
    %v776 = vxor.u32 %v775, 2147483648
    %v777 = vmul.f32 %v776, 1.442695
    %v778 = vpow.pop %v777
    %v779 = vadd.f32 %v778, 1.0
    %v780 = vrcp.pop %v779
    %v781 = vmul.f32 1.0, %v780
    %v782 = vadd.f32 %v763, %v113
    %v783 = vmul.f32 %v774, %v782
    %v784 = vadd.f32 %v685, %v783
    %v785 = vtanh.pop %v784
    %v786 = vsub.f32 1.0, %v781
    %v787 = vmul.f32 %v786, %v785
    %v788 = vmul.f32 %v781, %v679
    %v789 = vadd.f32 %v787, %v788
    %s790 = scalar_lea.vmem [#allocation11], 32
    %791 = vst [vmem:[%s790] sm:$0xff] %v789
    %s792 = scalar_lea.vmem [#allocation3], 120
    %v793 = vld [vmem:[%s792] sm:$0xff]
    %v794 = vld [vmem:[%s792 + $0x8] sm:$0xff]
    %v795 = vld [vmem:[%s792 + $0x10] sm:$0xff]
    %v796 = vpack.c.bf16 %v789, %v789
    %797 = vmatprep.subr.bf16.mxu0 %v201
    %798 = vmatpush1.bf16.msra.mxu0 %v200
    %799 = vmatprep.subr.bf16.mxu0 %v204
    %800 = vmatpush1.bf16.msra.mxu0 %v203
    %801 = vmatprep.subr.bf16.mxu0 %v207
    %802 = vmatpush1.bf16.msra.mxu0 %v206
    %803 = vmatprep.subr.bf16.mxu0 %v210
    %804 = vmatpush1.bf16.msra.mxu0 %v209
    %805 = vmatprep.subr.bf16.mxu0 %v213
    %806 = vmatpush1.bf16.msra.mxu0 %v212
    %807 = vmatprep.subr.bf16.mxu0 %v216
    %808 = vmatpush1.bf16.msra.mxu0 %v215
    %809 = vmatprep.subr.bf16.mxu0 %v219
    %810 = vmatpush1.bf16.msra.mxu0 %v218
    %811 = vmatprep.subr.bf16.mxu0 %v222
    %812 = vmatpush1.bf16.msra.mxu0 %v221
    %813 = vmatprep.subr.bf16.mxu0 0
    %814 = vmatpush1.bf16.msra.mxu0 0
    %815 = vmatprep.subr.bf16.mxu0 0
    %816 = vmatpush1.bf16.msra.mxu0 0
    %817 = vmatprep.subr.bf16.mxu0 0
    %818 = vmatpush1.bf16.msra.mxu0 0
    %819 = vmatprep.subr.bf16.mxu0 0
    %820 = vmatpush1.bf16.msra.mxu0 0
    %821 = vmatprep.subr.bf16.mxu0 0
    %822 = vmatpush1.bf16.msra.mxu0 0
    %823 = vmatprep.subr.bf16.mxu0 0
    %824 = vmatpush1.bf16.msra.mxu0 0
    %825 = vmatprep.subr.bf16.mxu0 0
    %826 = vmatpush1.bf16.msra.mxu0 0
    %827 = vmatprep.subr.bf16.mxu0 0
    %828 = vmatpush1.bf16.msra.mxu0 0
    %829 = vmatprep.mubr.bf16.mxu0 0
    %830 = vmatmul.mubr.bf16.gmra.mrb[0].mxu0 %v796
    %v831 = vpop.f32.mrb[0].mxu0
    %v832 = vadd.f32 0.0, %v831
    %v833 = vpop.f32.mrb[0].mxu0
    %v834 = vadd.f32 0.0, %v833
    %v835 = vpop.f32.mrb[0].mxu0
    %v836 = vpop.f32.mrb[0].mxu0
    %837 = vdwg.mxu0
    %838 = vmatprep.subr.bf16.mxu0 0
    %839 = vmatpush1.bf16.msra.mxu0 %v202
    %840 = vmatprep.subr.bf16.mxu0 0
    %841 = vmatpush1.bf16.msra.mxu0 %v205
    %842 = vmatprep.subr.bf16.mxu0 0
    %843 = vmatpush1.bf16.msra.mxu0 %v208
    %844 = vmatprep.subr.bf16.mxu0 0
    %845 = vmatpush1.bf16.msra.mxu0 %v211
    %846 = vmatprep.subr.bf16.mxu0 0
    %847 = vmatpush1.bf16.msra.mxu0 %v214
    %848 = vmatprep.subr.bf16.mxu0 0
    %849 = vmatpush1.bf16.msra.mxu0 %v217
    %850 = vmatprep.subr.bf16.mxu0 0
    %851 = vmatpush1.bf16.msra.mxu0 %v220
    %852 = vmatprep.subr.bf16.mxu0 0
    %853 = vmatpush1.bf16.msra.mxu0 %v223
    %854 = vmatprep.subr.bf16.mxu0 0
    %855 = vmatpush1.bf16.msra.mxu0 0
    %856 = vmatprep.subr.bf16.mxu0 0
    %857 = vmatpush1.bf16.msra.mxu0 0
    %858 = vmatprep.subr.bf16.mxu0 0
    %859 = vmatpush1.bf16.msra.mxu0 0
    %860 = vmatprep.subr.bf16.mxu0 0
    %861 = vmatpush1.bf16.msra.mxu0 0
    %862 = vmatprep.subr.bf16.mxu0 0
    %863 = vmatpush1.bf16.msra.mxu0 0
    %864 = vmatprep.subr.bf16.mxu0 0
    %865 = vmatpush1.bf16.msra.mxu0 0
    %866 = vmatprep.subr.bf16.mxu0 0
    %867 = vmatpush1.bf16.msra.mxu0 0
    %868 = vmatprep.subr.bf16.mxu0 0
    %869 = vmatpush1.bf16.msra.mxu0 0
    %870 = vmatprep.mubr.bf16.mxu0 0
    %871 = vmatmul.mubr.bf16.gmra.mrb[0].mxu0 %v796
    %v872 = vpop.f32.mrb[0].mxu0
    %v873 = vadd.f32 0.0, %v872
    %v874 = vpop.f32.mrb[0].mxu0
    %v875 = vpop.f32.mrb[0].mxu0
    %v876 = vpop.f32.mrb[0].mxu0
    %877 = vdwg.mxu0
    %v878 = vadd.f32 %v793, %v832
    %v879 = vxor.u32 %v878, 2147483648
    %v880 = vmul.f32 %v879, 1.442695
    %v881 = vpow.pop %v880
    %v882 = vadd.f32 %v881, 1.0
    %v883 = vrcp.pop %v882
    %v884 = vmul.f32 1.0, %v883
    %v885 = vadd.f32 %v794, %v834
    %v886 = vxor.u32 %v885, 2147483648
    %v887 = vmul.f32 %v886, 1.442695
    %v888 = vpow.pop %v887
    %v889 = vadd.f32 %v888, 1.0
    %v890 = vrcp.pop %v889
    %v891 = vmul.f32 1.0, %v890
    %v892 = vadd.f32 %v873, %v113
    %v893 = vmul.f32 %v884, %v892
    %v894 = vadd.f32 %v795, %v893
    %v895 = vtanh.pop %v894
    %v896 = vsub.f32 1.0, %v891
    %v897 = vmul.f32 %v896, %v895
    %v898 = vmul.f32 %v891, %v789
    %v899 = vadd.f32 %v897, %v898
    %s900 = scalar_lea.vmem [#allocation11], 40
    %901 = vst [vmem:[%s900] sm:$0xff] %v899
    %s902 = scalar_lea.vmem [#allocation3], 144
    %v903 = vld [vmem:[%s902] sm:$0xff]
    %v904 = vld [vmem:[%s902 + $0x8] sm:$0xff]
    %v905 = vld [vmem:[%s902 + $0x10] sm:$0xff]
    %v906 = vpack.c.bf16 %v899, %v899
    %907 = vmatprep.subr.bf16.mxu0 %v201
    %908 = vmatpush1.bf16.msra.mxu0 %v200
    %909 = vmatprep.subr.bf16.mxu0 %v204
    %910 = vmatpush1.bf16.msra.mxu0 %v203
    %911 = vmatprep.subr.bf16.mxu0 %v207
    %912 = vmatpush1.bf16.msra.mxu0 %v206
    %913 = vmatprep.subr.bf16.mxu0 %v210
    %914 = vmatpush1.bf16.msra.mxu0 %v209
    %915 = vmatprep.subr.bf16.mxu0 %v213
    %916 = vmatpush1.bf16.msra.mxu0 %v212
    %917 = vmatprep.subr.bf16.mxu0 %v216
    %918 = vmatpush1.bf16.msra.mxu0 %v215
    %919 = vmatprep.subr.bf16.mxu0 %v219
    %920 = vmatpush1.bf16.msra.mxu0 %v218
    %921 = vmatprep.subr.bf16.mxu0 %v222
    %922 = vmatpush1.bf16.msra.mxu0 %v221
    %923 = vmatprep.subr.bf16.mxu0 0
    %924 = vmatpush1.bf16.msra.mxu0 0
    %925 = vmatprep.subr.bf16.mxu0 0
    %926 = vmatpush1.bf16.msra.mxu0 0
    %927 = vmatprep.subr.bf16.mxu0 0
    %928 = vmatpush1.bf16.msra.mxu0 0
    %929 = vmatprep.subr.bf16.mxu0 0
    %930 = vmatpush1.bf16.msra.mxu0 0
    %931 = vmatprep.subr.bf16.mxu0 0
    %932 = vmatpush1.bf16.msra.mxu0 0
    %933 = vmatprep.subr.bf16.mxu0 0
    %934 = vmatpush1.bf16.msra.mxu0 0
    %935 = vmatprep.subr.bf16.mxu0 0
    %936 = vmatpush1.bf16.msra.mxu0 0
    %937 = vmatprep.subr.bf16.mxu0 0
    %938 = vmatpush1.bf16.msra.mxu0 0
    %939 = vmatprep.mubr.bf16.mxu0 0
    %940 = vmatmul.mubr.bf16.gmra.mrb[0].mxu0 %v906
    %v941 = vpop.f32.mrb[0].mxu0
    %v942 = vadd.f32 0.0, %v941
    %v943 = vpop.f32.mrb[0].mxu0
    %v944 = vadd.f32 0.0, %v943
    %v945 = vpop.f32.mrb[0].mxu0
    %v946 = vpop.f32.mrb[0].mxu0
    %947 = vdwg.mxu0
    %948 = vmatprep.subr.bf16.mxu0 0
    %949 = vmatpush1.bf16.msra.mxu0 %v202
    %950 = vmatprep.subr.bf16.mxu0 0
    %951 = vmatpush1.bf16.msra.mxu0 %v205
    %952 = vmatprep.subr.bf16.mxu0 0
    %953 = vmatpush1.bf16.msra.mxu0 %v208
    %954 = vmatprep.subr.bf16.mxu0 0
    %955 = vmatpush1.bf16.msra.mxu0 %v211
    %956 = vmatprep.subr.bf16.mxu0 0
    %957 = vmatpush1.bf16.msra.mxu0 %v214
    %958 = vmatprep.subr.bf16.mxu0 0
    %959 = vmatpush1.bf16.msra.mxu0 %v217
    %960 = vmatprep.subr.bf16.mxu0 0
    %961 = vmatpush1.bf16.msra.mxu0 %v220
    %962 = vmatprep.subr.bf16.mxu0 0
    %963 = vmatpush1.bf16.msra.mxu0 %v223
    %964 = vmatprep.subr.bf16.mxu0 0
    %965 = vmatpush1.bf16.msra.mxu0 0
    %966 = vmatprep.subr.bf16.mxu0 0
    %967 = vmatpush1.bf16.msra.mxu0 0
    %968 = vmatprep.subr.bf16.mxu0 0
    %969 = vmatpush1.bf16.msra.mxu0 0
    %970 = vmatprep.subr.bf16.mxu0 0
    %971 = vmatpush1.bf16.msra.mxu0 0
    %972 = vmatprep.subr.bf16.mxu0 0
    %973 = vmatpush1.bf16.msra.mxu0 0
    %974 = vmatprep.subr.bf16.mxu0 0
    %975 = vmatpush1.bf16.msra.mxu0 0
    %976 = vmatprep.subr.bf16.mxu0 0
    %977 = vmatpush1.bf16.msra.mxu0 0
    %978 = vmatprep.subr.bf16.mxu0 0
    %979 = vmatpush1.bf16.msra.mxu0 0
    %980 = vmatprep.mubr.bf16.mxu0 0
    %981 = vmatmul.mubr.bf16.gmra.mrb[0].mxu0 %v906
    %v982 = vpop.f32.mrb[0].mxu0
    %v983 = vadd.f32 0.0, %v982
    %v984 = vpop.f32.mrb[0].mxu0
    %v985 = vpop.f32.mrb[0].mxu0
    %v986 = vpop.f32.mrb[0].mxu0
    %987 = vdwg.mxu0
    %v988 = vadd.f32 %v903, %v942
    %v989 = vxor.u32 %v988, 2147483648
    %v990 = vmul.f32 %v989, 1.442695
    %v991 = vpow.pop %v990
    %v992 = vadd.f32 %v991, 1.0
    %v993 = vrcp.pop %v992
    %v994 = vmul.f32 1.0, %v993
    %v995 = vadd.f32 %v904, %v944
    %v996 = vxor.u32 %v995, 2147483648
    %v997 = vmul.f32 %v996, 1.442695
    %v998 = vpow.pop %v997
    %v999 = vadd.f32 %v998, 1.0
    %v1000 = vrcp.pop %v999
    %v1001 = vmul.f32 1.0, %v1000
    %v1002 = vadd.f32 %v983, %v113
    %v1003 = vmul.f32 %v994, %v1002
    %v1004 = vadd.f32 %v905, %v1003
    %v1005 = vtanh.pop %v1004
    %v1006 = vsub.f32 1.0, %v1001
    %v1007 = vmul.f32 %v1006, %v1005
    %v1008 = vmul.f32 %v1001, %v899
    %v1009 = vadd.f32 %v1007, %v1008
    %s1010 = scalar_lea.vmem [#allocation11], 48
    %1011 = vst [vmem:[%s1010] sm:$0xff] %v1009
    %s1012 = scalar_lea.vmem [#allocation3], 168
    %v1013 = vld [vmem:[%s1012] sm:$0xff]
    %v1014 = vld [vmem:[%s1012 + $0x8] sm:$0xff]
    %v1015 = vld [vmem:[%s1012 + $0x10] sm:$0xff]
    %v1016 = vpack.c.bf16 %v1009, %v1009
    %1017 = vmatprep.subr.bf16.mxu0 %v201
    %1018 = vmatpush1.bf16.msra.mxu0 %v200
    %1019 = vmatprep.subr.bf16.mxu0 %v204
    %1020 = vmatpush1.bf16.msra.mxu0 %v203
    %1021 = vmatprep.subr.bf16.mxu0 %v207
    %1022 = vmatpush1.bf16.msra.mxu0 %v206
    %1023 = vmatprep.subr.bf16.mxu0 %v210
    %1024 = vmatpush1.bf16.msra.mxu0 %v209
    %1025 = vmatprep.subr.bf16.mxu0 %v213
    %1026 = vmatpush1.bf16.msra.mxu0 %v212
    %1027 = vmatprep.subr.bf16.mxu0 %v216
    %1028 = vmatpush1.bf16.msra.mxu0 %v215
    %1029 = vmatprep.subr.bf16.mxu0 %v219
    %1030 = vmatpush1.bf16.msra.mxu0 %v218
    %1031 = vmatprep.subr.bf16.mxu0 %v222
    %1032 = vmatpush1.bf16.msra.mxu0 %v221
    %1033 = vmatprep.subr.bf16.mxu0 0
    %1034 = vmatpush1.bf16.msra.mxu0 0
    %1035 = vmatprep.subr.bf16.mxu0 0
    %1036 = vmatpush1.bf16.msra.mxu0 0
    %1037 = vmatprep.subr.bf16.mxu0 0
    %1038 = vmatpush1.bf16.msra.mxu0 0
    %1039 = vmatprep.subr.bf16.mxu0 0
    %1040 = vmatpush1.bf16.msra.mxu0 0
    %1041 = vmatprep.subr.bf16.mxu0 0
    %1042 = vmatpush1.bf16.msra.mxu0 0
    %1043 = vmatprep.subr.bf16.mxu0 0
    %1044 = vmatpush1.bf16.msra.mxu0 0
    %1045 = vmatprep.subr.bf16.mxu0 0
    %1046 = vmatpush1.bf16.msra.mxu0 0
    %1047 = vmatprep.subr.bf16.mxu0 0
    %1048 = vmatpush1.bf16.msra.mxu0 0
    %1049 = vmatprep.mubr.bf16.mxu0 0
    %1050 = vmatmul.mubr.bf16.gmra.mrb[0].mxu0 %v1016
    %v1051 = vpop.f32.mrb[0].mxu0
    %v1052 = vadd.f32 0.0, %v1051
    %v1053 = vpop.f32.mrb[0].mxu0
    %v1054 = vadd.f32 0.0, %v1053
    %v1055 = vpop.f32.mrb[0].mxu0
    %v1056 = vpop.f32.mrb[0].mxu0
    %1057 = vdwg.mxu0
    %1058 = vmatprep.subr.bf16.mxu0 0
    %1059 = vmatpush1.bf16.msra.mxu0 %v202
    %1060 = vmatprep.subr.bf16.mxu0 0
    %1061 = vmatpush1.bf16.msra.mxu0 %v205
    %1062 = vmatprep.subr.bf16.mxu0 0
    %1063 = vmatpush1.bf16.msra.mxu0 %v208
    %1064 = vmatprep.subr.bf16.mxu0 0
    %1065 = vmatpush1.bf16.msra.mxu0 %v211
    %1066 = vmatprep.subr.bf16.mxu0 0
    %1067 = vmatpush1.bf16.msra.mxu0 %v214
    %1068 = vmatprep.subr.bf16.mxu0 0
    %1069 = vmatpush1.bf16.msra.mxu0 %v217
    %1070 = vmatprep.subr.bf16.mxu0 0
    %1071 = vmatpush1.bf16.msra.mxu0 %v220
    %1072 = vmatprep.subr.bf16.mxu0 0
    %1073 = vmatpush1.bf16.msra.mxu0 %v223
    %1074 = vmatprep.subr.bf16.mxu0 0
    %1075 = vmatpush1.bf16.msra.mxu0 0
    %1076 = vmatprep.subr.bf16.mxu0 0
    %1077 = vmatpush1.bf16.msra.mxu0 0
    %1078 = vmatprep.subr.bf16.mxu0 0
    %1079 = vmatpush1.bf16.msra.mxu0 0
    %1080 = vmatprep.subr.bf16.mxu0 0
    %1081 = vmatpush1.bf16.msra.mxu0 0
    %1082 = vmatprep.subr.bf16.mxu0 0
    %1083 = vmatpush1.bf16.msra.mxu0 0
    %1084 = vmatprep.subr.bf16.mxu0 0
    %1085 = vmatpush1.bf16.msra.mxu0 0
    %1086 = vmatprep.subr.bf16.mxu0 0
    %1087 = vmatpush1.bf16.msra.mxu0 0
    %1088 = vmatprep.subr.bf16.mxu0 0
    %1089 = vmatpush1.bf16.msra.mxu0 0
    %1090 = vmatprep.mubr.bf16.mxu0 0
    %1091 = vmatmul.mubr.bf16.gmra.mrb[0].mxu0 %v1016
    %v1092 = vpop.f32.mrb[0].mxu0
    %v1093 = vadd.f32 0.0, %v1092
    %v1094 = vpop.f32.mrb[0].mxu0
    %v1095 = vpop.f32.mrb[0].mxu0
    %v1096 = vpop.f32.mrb[0].mxu0
    %1097 = vdwg.mxu0
    %v1098 = vadd.f32 %v1013, %v1052
    %v1099 = vxor.u32 %v1098, 2147483648
    %v1100 = vmul.f32 %v1099, 1.442695
    %v1101 = vpow.pop %v1100
    %v1102 = vadd.f32 %v1101, 1.0
    %v1103 = vrcp.pop %v1102
    %v1104 = vmul.f32 1.0, %v1103
    %v1105 = vadd.f32 %v1014, %v1054
    %v1106 = vxor.u32 %v1105, 2147483648
    %v1107 = vmul.f32 %v1106, 1.442695
    %v1108 = vpow.pop %v1107
    %v1109 = vadd.f32 %v1108, 1.0
    %v1110 = vrcp.pop %v1109
    %v1111 = vmul.f32 1.0, %v1110
    %v1112 = vadd.f32 %v1093, %v113
    %v1113 = vmul.f32 %v1104, %v1112
    %v1114 = vadd.f32 %v1015, %v1113
    %v1115 = vtanh.pop %v1114
    %v1116 = vsub.f32 1.0, %v1111
    %v1117 = vmul.f32 %v1116, %v1115
    %v1118 = vmul.f32 %v1111, %v1009
    %v1119 = vadd.f32 %v1117, %v1118
    %s1120 = scalar_lea.vmem [#allocation11], 56
    %1121 = vst [vmem:[%s1120] sm:$0xff] %v1119
    %1122 = vst [vmem:[#allocation2] sm:$0xff] %v1119
    // Predicated region
    $region38: #{tpu_custom_call.1} parent=1 // pred_check
      _
    $region39: #{tpu_custom_call.1} parent=1 // pred_check_branch
      %1124 = sbr.rel (0) target = $region41
    $region40: #{tpu_custom_call.1} parent=1 // pred_region
      %s1126 = ssub.s32 1024, 1024
      %1127 = vsyncadd [#allocation5], %s1126
      %s1128 = sshll.u32 [#allocation11], 4
      %s1129 = int_to_ptr.vmem [resolvable:$true] %s1128
      %1134 = dma.vmem_to_hbm [thread:$0]  %s1129, 1024, %s4, [#allocation5], 128, 128, 8
    $region41: #{tpu_custom_call.1} parent=1 // pred_fallthru
      _
    // Predicated region
    $region42: #{tpu_custom_call.1} parent=1 // pred_check
      _
    $region43: #{tpu_custom_call.1} parent=1 // pred_check_branch
      %1136 = sbr.rel (0) target = $region45
    $region44: #{tpu_custom_call.1} parent=1 // pred_region
      %1137 = dma.done [#allocation5], 1024
    $region45: #{tpu_custom_call.1} parent=1 // pred_fallthru
      _
    %1138 = vsyncpa [#allocation4], 1
    %1139 = vsyncpa [#allocation7], 1
    %1140 = vsyncpa [#allocation10], 1
    %1141 = vsyncpa [#allocation5], 1

</llo_original>
